<compile_context>
chip_gen: v6e
topology: v6e:2x2x1
jax: 0.10.0
libtpu: 0.0.40
codegen_flags: <defaults>
</compile_context>

<pallas_src>
import math
import jax
import jax.numpy as jnp
from jax.experimental import pallas as pl
from jax.experimental.pallas import tpu as pltpu

# Keep every f32 matmul (kernel + reference) at full f32 precision on TPU.
jax.config.update("jax_default_matmul_precision", "highest")
_HIGHEST = jax.lax.Precision.HIGHEST

IN_DIM = 32
OUT_DIM = 64
RANK = 8
ALPHA = 16.0
GROUP_SIZE = 8          # weight_qat_config.group_size (int4 symmetric per-group)

# activation fake-quant range: int8, per-token, asymmetric
A_QMIN, A_QMAX = -128.0, 127.0
# weight fake-quant range: int4, per-group, symmetric (zero_point = 0)
W_QMIN, W_QMAX = -8.0, 7.0
EPS = float(jnp.finfo(jnp.float32).eps)
LORA_SCALE = ALPHA / RANK


def _round_up(v, m):
    return (v + m - 1) // m * m


def _pick_tile(dim, max_tile):
    """Return (tile, padded_dim).

    Small dims use a full-dim block (block_shape == array dim is always legal,
    even when not (8,128)-aligned, and avoids any padded HBM copy).  Large dims
    get the widest lane-dense tile that divides them, padding only as a fallback.
    """
    if dim <= max_tile:
        return dim, dim
    for t in (max_tile, 256, 128):
        if dim % t == 0:
            return t, dim
    padded = _round_up(dim, 256)
    return 256, padded


def qat_lora_kernel(x_ref, wq_ref, at_ref, bt_ref, out_ref, xfq_ref, mid_ref):
    """One (M-tile, N-tile) grid step.  Grid = (nM, nN): M outer, N inner.

    x_ref  : (TM, K)  unquantized activations (block depends on M only)
    wq_ref : (K, TN)  fake-quantized weight, pre-transposed in the wrapper
    at_ref : (K, R)   lora_a^T
    bt_ref : (R, TN)  lora_b^T
    xfq_ref: (TM, K)  VMEM cache of fake-quantized activations (per M tile)
    mid_ref: (TM, R)  VMEM cache of (alpha/r) * x @ A^T        (per M tile)
    """
    # Per-M-tile work: the activation fake-quant and the LoRA "mid" matmul are
    # independent of the N tile, so compute them once when the N sweep for this
    # M tile starts and reuse the cached results for all remaining N tiles.
    @pl.when(pl.program_id(1) == 0)
    def _():
        x = x_ref[...]                                             # (TM, K) f32
        # int8 per-token asymmetric fake-quant (exact torchao math, f32 VPU).
        min_neg = jnp.minimum(jnp.min(x, axis=-1, keepdims=True), 0.0)
        max_pos = jnp.maximum(jnp.max(x, axis=-1, keepdims=True), 0.0)
        a_scale = jnp.maximum((max_pos - min_neg) / (A_QMAX - A_QMIN), EPS)
        zp = jnp.clip(A_QMIN - jnp.round(min_neg / a_scale), A_QMIN, A_QMAX)
        q = jnp.clip(jnp.round(x / a_scale) + zp, A_QMIN, A_QMAX)
        xfq_ref[...] = (q - zp) * a_scale
        # LoRA scale applied to the small (TM, R) intermediate, not the output.
        mid_ref[...] = LORA_SCALE * jnp.dot(
            x, at_ref[...], preferred_element_type=jnp.float32,
            precision=_HIGHEST)

    # Base QAT matmul + LoRA expansion for this N tile (f32 MXU, f32 accumulate).
    base = jnp.dot(xfq_ref[...], wq_ref[...],
                   preferred_element_type=jnp.float32, precision=_HIGHEST)
    lora = jnp.dot(mid_ref[...], bt_ref[...],
                   preferred_element_type=jnp.float32, precision=_HIGHEST)
    out_ref[...] = base + lora


def prepare_qat_lora_params(weight, lora_a_w, lora_b_w, max_tile_n=512):
    """One-time parameter prep (outside the per-token hot path).

    Applies the int4 per-group symmetric weight fake-quant, transposes everything
    to K-major, and pads the N axis only if it has to be grid-tiled.
    """
    n, k = weight.shape
    r = lora_a_w.shape[0]
    assert k % GROUP_SIZE == 0, "in_dim must be divisible by group_size"

    w = weight.astype(jnp.float32)
    amax = jnp.max(jnp.abs(w.reshape(n, k // GROUP_SIZE, GROUP_SIZE)), axis=-1)
    scale = jnp.repeat(jnp.maximum(amax / ((W_QMAX - W_QMIN) / 2.0), EPS),
                       GROUP_SIZE, axis=-1)
    w_fq = jnp.clip(jnp.round(w / scale), W_QMIN, W_QMAX) * scale

    # TODO(synk): for serving-scale shapes ship w_fq / at / bt as bf16 (or packed
    # int4 + scales) to cut HBM traffic; kept f32 here for exact parity with the
    # f32 torch module.
    wq_t = w_fq.T                                     # (K, N)
    at = lora_a_w.astype(jnp.float32).T               # (K, R)
    bt = lora_b_w.astype(jnp.float32).T               # (R, N)

    _, n_pad = _pick_tile(n, max_tile_n)
    if n_pad != n:
        wq_t = jnp.zeros((k, n_pad), jnp.float32).at[:, :n].set(wq_t)
        bt = jnp.zeros((r, n_pad), jnp.float32).at[:, :n].set(bt)
    return wq_t, at, bt, n


def qat_lora_linear(x, params, max_tile_m=512, max_tile_n=512):
    """Per-call hot path: only x handling happens here."""
    wq_t, at, bt, n = params
    k, n_pad = wq_t.shape
    r = at.shape[1]
    *lead, k_in = x.shape
    assert k_in == k, "x last dim must equal in_dim"
    m = math.prod(lead) if lead else 1

    x2 = x.reshape(m, k).astype(jnp.float32)
    tm, m_pad = _pick_tile(m, max_tile_m)
    tn, n_pad2 = _pick_tile(n_pad, max_tile_n)
    assert n_pad2 == n_pad
    if m_pad != m:
        # Zero rows fake-quantize to exactly zero -> padded output rows are zero.
        x2 = jnp.zeros((m_pad, k), jnp.float32).at[:m].set(x2)

    grid = (m_pad // tm, n_pad // tn)   # M outer ("parallel"), N inner ("arbitrary")

    out = pl.pallas_call(
        qat_lora_kernel,
        out_shape=jax.ShapeDtypeStruct((m_pad, n_pad), jnp.float32),
        grid=grid,
        in_specs=[
            pl.BlockSpec((tm, k), lambda i, j: (i, 0)),    # x (full K resident)
            pl.BlockSpec((k, tn), lambda i, j: (0, j)),    # fake-quant weight^T
            pl.BlockSpec((k, r), lambda i, j: (0, 0)),     # lora_a^T
            pl.BlockSpec((r, tn), lambda i, j: (0, j)),    # lora_b^T
        ],
        out_specs=pl.BlockSpec((tm, tn), lambda i, j: (i, j)),
        scratch_shapes=[
            pltpu.VMEM((tm, k), jnp.float32),              # cached x_fq
            pltpu.VMEM((tm, r), jnp.float32),              # cached LoRA mid
        ],
        compiler_params=pltpu.CompilerParams(
            # M ("parallel") may be sharded across TensorCores (v7x megacore).
            # N must stay "arbitrary": the x_fq / mid caches assume the N sweep
            # of each M tile starts at j == 0 on the core that owns it.
            dimension_semantics=("parallel", "arbitrary"),
            # 64 MiB is safe on every generation incl. v7x's 64 MiB physical
            # VMEM; v5e/v6e (128 MiB) can go higher when using 512-wide tiles.
            vmem_limit_bytes=64 * 1024 * 1024,
        ),
    )(x2, wq_t, at, bt)

    return out[:m, :n].reshape(*lead, n)


def ref_forward(x, weight, lora_a_w, lora_b_w):
    """Pure-JAX (exact f32) reference of QATLoRALinear.forward (dropout=0, no bias)."""
    *lead, k = x.shape
    xf = x.reshape(-1, k).astype(jnp.float32)
    w = weight.astype(jnp.float32)
    n = w.shape[0]

    min_neg = jnp.minimum(jnp.min(xf, -1, keepdims=True), 0.0)
    max_pos = jnp.maximum(jnp.max(xf, -1, keepdims=True), 0.0)
    a_scale = jnp.maximum((max_pos - min_neg) / (A_QMAX - A_QMIN), EPS)
    zp = jnp.clip(A_QMIN - jnp.round(min_neg / a_scale), A_QMIN, A_QMAX)
    x_fq = (jnp.clip(jnp.round(xf / a_scale) + zp, A_QMIN, A_QMAX) - zp) * a_scale

    amax = jnp.max(jnp.abs(w.reshape(n, k // GROUP_SIZE, GROUP_SIZE)), axis=-1)
    w_scale = jnp.repeat(jnp.maximum(amax / ((W_QMAX - W_QMIN) / 2.0), EPS),
                         GROUP_SIZE, axis=-1)
    w_fq = jnp.clip(jnp.round(w / w_scale), W_QMIN, W_QMAX) * w_scale

    base = jnp.dot(x_fq, w_fq.T, precision=_HIGHEST)
    lora = LORA_SCALE * jnp.dot(
        jnp.dot(xf, lora_a_w.astype(jnp.float32).T, precision=_HIGHEST),
        lora_b_w.astype(jnp.float32).T, precision=_HIGHEST)
    return (base + lora).reshape(*lead, n)


if __name__ == "__main__":
    key = jax.random.PRNGKey(0)
    kx, kw, ka, kb = jax.random.split(key, 4)

    # nn.Linear / lora_a use kaiming_uniform_(a=sqrt(5)) -> U(-1/sqrt(fan_in), 1/sqrt(fan_in))
    w_bound = 1.0 / math.sqrt(IN_DIM)
    weight = jax.random.uniform(kw, (OUT_DIM, IN_DIM), jnp.float32, -w_bound, w_bound)
    lora_a = jax.random.uniform(ka, (RANK, IN_DIM), jnp.float32, -w_bound, w_bound)
    # Module init zeros lora_b (which would hide LoRA-path bugs); use small
    # deterministic values so the LoRA branch is actually exercised.
    lora_b = 0.05 * jax.random.normal(kb, (OUT_DIM, RANK), jnp.float32)

    # input: (batch=2, seq=8, in_dim=32)
    x = jax.random.normal(kx, (2, 8, IN_DIM), jnp.float32)

    params = prepare_qat_lora_params(weight, lora_a, lora_b)   # one-time prep
    out = qat_lora_linear(x, params)
    out = jax.block_until_ready(out)

    ref = ref_forward(x, weight, lora_a, lora_b)
    assert out.shape == (2, 8, OUT_DIM)
    assert jnp.allclose(out, ref, atol=2e-2, rtol=2e-2), "mismatch vs. JAX reference"

    # TODO(synk): dropout > 0 (train-time stochastic mask) not implemented; module default is 0.0.
    print("KERNEL_OK")
</pallas_src>

<mosaic_0001>
module attributes {stable_mosaic.version = 11 : i64} {
  func.func @qat_lora_kernel(%arg0: i32, %arg1: i32, %arg2: memref<16x32xf32, #tpu.memory_space<vmem>>, %arg3: memref<32x64xf32, #tpu.memory_space<vmem>>, %arg4: memref<32x8xf32, #tpu.memory_space<vmem>>, %arg5: memref<8x64xf32, #tpu.memory_space<vmem>>, %arg6: memref<16x64xf32, #tpu.memory_space<vmem>>, %arg7: memref<16x32xf32, #tpu.memory_space<vmem>>, %arg8: memref<16x8xf32, #tpu.memory_space<vmem>>) attributes {dimension_semantics = [#tpu.dimension_semantics<parallel>, #tpu.dimension_semantics<arbitrary>], iteration_bounds = array<i64: 1, 1>, scalar_prefetch = 0 : i64, scratch_operands = 2 : i64, tpu.core_type = #tpu.core_type<tc>, window_params = [{transform_indices = @transform_0, window_bounds = array<i64: 16, 32>}, {transform_indices = @transform_1, window_bounds = array<i64: 32, 64>}, {pipeline_mode = #tpu.pipeline_mode<synchronous>, transform_indices = @transform_2, window_bounds = array<i64: 32, 8>}, {transform_indices = @transform_3, window_bounds = array<i64: 8, 64>}, {transform_indices = @transform_4, window_bounds = array<i64: 16, 64>}]} {
    %c0_i32 = arith.constant 0 : i32
    %0 = arith.cmpi eq, %arg1, %c0_i32 : i32
    %1 = arith.extui %0 : i1 to i32
    %c0_i32_0 = arith.constant 0 : i32
    %2 = arith.cmpi ne, %1, %c0_i32_0 : i32
    scf.if %2 {
      %c0_11 = arith.constant 0 : index
      %c0_12 = arith.constant 0 : index
      %11 = vector.load %arg2[%c0_11, %c0_12] : memref<16x32xf32, #tpu.memory_space<vmem>>, vector<16x32xf32>
      %cst_13 = arith.constant dense<0x7F800000> : vector<16xf32>
      %12 = vector.multi_reduction <minimumf>, %11, %cst_13 [1] : vector<16x32xf32> to vector<16xf32>
      %13 = vector.shape_cast %12 : vector<16xf32> to vector<16x1xf32>
      %cst_14 = arith.constant 0.000000e+00 : f32
      %14 = vector.broadcast %cst_14 : f32 to vector<16x1xf32>
      %15 = arith.minimumf %13, %14 : vector<16x1xf32>
      %cst_15 = arith.constant dense<0xFF800000> : vector<16xf32>
      %16 = vector.multi_reduction <maximumf>, %11, %cst_15 [1] : vector<16x32xf32> to vector<16xf32>
      %17 = vector.shape_cast %16 : vector<16xf32> to vector<16x1xf32>
      %cst_16 = arith.constant 0.000000e+00 : f32
      %18 = vector.broadcast %cst_16 : f32 to vector<16x1xf32>
      %19 = arith.maximumf %17, %18 : vector<16x1xf32>
      %20 = arith.subf %19, %15 : vector<16x1xf32>
      %cst_17 = arith.constant 2.550000e+02 : f32
      %21 = vector.broadcast %cst_17 : f32 to vector<16x1xf32>
      %22 = arith.divf %20, %21 : vector<16x1xf32>
      %cst_18 = arith.constant 1.1920929E-7 : f32
      %23 = vector.broadcast %cst_18 : f32 to vector<16x1xf32>
      %24 = arith.maximumf %22, %23 : vector<16x1xf32>
      %25 = arith.divf %15, %24 : vector<16x1xf32>
      %26 = math.roundeven %25 : vector<16x1xf32>
      %cst_19 = arith.constant -1.280000e+02 : f32
      %27 = vector.broadcast %cst_19 : f32 to vector<16x1xf32>
      %28 = arith.subf %27, %26 : vector<16x1xf32>
      %cst_20 = arith.constant -1.280000e+02 : f32
      %cst_21 = arith.constant 1.270000e+02 : f32
      %29 = vector.broadcast %cst_20 : f32 to vector<16x1xf32>
      %30 = arith.maximumf %29, %28 : vector<16x1xf32>
      %31 = vector.broadcast %cst_21 : f32 to vector<16x1xf32>
      %32 = arith.minimumf %31, %30 : vector<16x1xf32>
      %33 = vector.broadcast %24 : vector<16x1xf32> to vector<16x32xf32>
      %34 = arith.divf %11, %33 : vector<16x32xf32>
      %35 = math.roundeven %34 : vector<16x32xf32>
      %36 = vector.broadcast %32 : vector<16x1xf32> to vector<16x32xf32>
      %37 = arith.addf %35, %36 : vector<16x32xf32>
      %cst_22 = arith.constant -1.280000e+02 : f32
      %cst_23 = arith.constant 1.270000e+02 : f32
      %38 = vector.broadcast %cst_22 : f32 to vector<16x32xf32>
      %39 = arith.maximumf %38, %37 : vector<16x32xf32>
      %40 = vector.broadcast %cst_23 : f32 to vector<16x32xf32>
      %41 = arith.minimumf %40, %39 : vector<16x32xf32>
      %42 = vector.broadcast %32 : vector<16x1xf32> to vector<16x32xf32>
      %43 = arith.subf %41, %42 : vector<16x32xf32>
      %44 = vector.broadcast %24 : vector<16x1xf32> to vector<16x32xf32>
      %45 = arith.mulf %43, %44 : vector<16x32xf32>
      %c0_24 = arith.constant 0 : index
      %c0_25 = arith.constant 0 : index
      %46 = vector.load %arg7[%c0_24, %c0_25] : memref<16x32xf32, #tpu.memory_space<vmem>>, vector<16x32xf32>
      tpu.vector_store %arg7[%c0_24, %c0_25], %45 {strides = array<i32>} : memref<16x32xf32, #tpu.memory_space<vmem>>, vector<16x32xf32>,
      %c0_26 = arith.constant 0 : index
      %c0_27 = arith.constant 0 : index
      %47 = vector.load %arg4[%c0_26, %c0_27] : memref<32x8xf32, #tpu.memory_space<vmem>>, vector<32x8xf32>
      %cst_28 = arith.constant dense<0.000000e+00> : vector<16x8xf32>
      %48 = tpu.matmul %11, %47, %cst_28 {dimension_numbers = #tpu.dot_dimension_numbers<[1], [0], [0], [1], [0, 0, 1, 1], [], []>, precision = #tpu.contract_precision<fp32>} : vector<16x32xf32>, vector<32x8xf32>, vector<16x8xf32> -> vector<16x8xf32>
      %cst_29 = arith.constant 2.000000e+00 : f32
      %49 = vector.broadcast %cst_29 : f32 to vector<16x8xf32>
      %50 = arith.mulf %49, %48 : vector<16x8xf32>
      %c0_30 = arith.constant 0 : index
      %c0_31 = arith.constant 0 : index
      %51 = vector.load %arg8[%c0_30, %c0_31] : memref<16x8xf32, #tpu.memory_space<vmem>>, vector<16x8xf32>
      tpu.vector_store %arg8[%c0_30, %c0_31], %50 {strides = array<i32>} : memref<16x8xf32, #tpu.memory_space<vmem>>, vector<16x8xf32>,
    } else {
    }
    %c0 = arith.constant 0 : index
    %c0_1 = arith.constant 0 : index
    %3 = vector.load %arg7[%c0, %c0_1] : memref<16x32xf32, #tpu.memory_space<vmem>>, vector<16x32xf32>
    %c0_2 = arith.constant 0 : index
    %c0_3 = arith.constant 0 : index
    %4 = vector.load %arg3[%c0_2, %c0_3] : memref<32x64xf32, #tpu.memory_space<vmem>>, vector<32x64xf32>
    %cst = arith.constant dense<0.000000e+00> : vector<16x64xf32>
    %5 = tpu.matmul %3, %4, %cst {dimension_numbers = #tpu.dot_dimension_numbers<[1], [0], [0], [1], [0, 0, 1, 1], [], []>, precision = #tpu.contract_precision<fp32>} : vector<16x32xf32>, vector<32x64xf32>, vector<16x64xf32> -> vector<16x64xf32>
    %c0_4 = arith.constant 0 : index
    %c0_5 = arith.constant 0 : index
    %6 = vector.load %arg8[%c0_4, %c0_5] : memref<16x8xf32, #tpu.memory_space<vmem>>, vector<16x8xf32>
    %c0_6 = arith.constant 0 : index
    %c0_7 = arith.constant 0 : index
    %7 = vector.load %arg5[%c0_6, %c0_7] : memref<8x64xf32, #tpu.memory_space<vmem>>, vector<8x64xf32>
    %cst_8 = arith.constant dense<0.000000e+00> : vector<16x64xf32>
    %8 = tpu.matmul %6, %7, %cst_8 {dimension_numbers = #tpu.dot_dimension_numbers<[1], [0], [0], [1], [0, 0, 1, 1], [], []>, precision = #tpu.contract_precision<fp32>} : vector<16x8xf32>, vector<8x64xf32>, vector<16x64xf32> -> vector<16x64xf32>
    %9 = arith.addf %5, %8 : vector<16x64xf32>
    %c0_9 = arith.constant 0 : index
    %c0_10 = arith.constant 0 : index
    %10 = vector.load %arg6[%c0_9, %c0_10] : memref<16x64xf32, #tpu.memory_space<vmem>>, vector<16x64xf32>
    tpu.vector_store %arg6[%c0_9, %c0_10], %9 {strides = array<i32>} : memref<16x64xf32, #tpu.memory_space<vmem>>, vector<16x64xf32>,
    return
  }
  func.func @transform_0(%arg0: i32, %arg1: i32) -> (i32, i32) {
    %c0_i32 = arith.constant 0 : i32
    %c0_i32_0 = arith.constant 0 : i32
    return %arg0, %c0_i32 : i32, i32
  }
  func.func @transform_1(%arg0: i32, %arg1: i32) -> (i32, i32) {
    %c0_i32 = arith.constant 0 : i32
    %c0_i32_0 = arith.constant 0 : i32
    return %c0_i32, %arg1 : i32, i32
  }
  func.func @transform_2(%arg0: i32, %arg1: i32) -> (i32, i32) {
    %c0_i32 = arith.constant 0 : i32
    %c0_i32_0 = arith.constant 0 : i32
    %c0_i32_1 = arith.constant 0 : i32
    return %c0_i32, %c0_i32_0 : i32, i32
  }
  func.func @transform_3(%arg0: i32, %arg1: i32) -> (i32, i32) {
    %c0_i32 = arith.constant 0 : i32
    %c0_i32_0 = arith.constant 0 : i32
    return %c0_i32, %arg1 : i32, i32
  }
  func.func @transform_4(%arg0: i32, %arg1: i32) -> (i32, i32) {
    %c0_i32 = arith.constant 0 : i32
    return %arg0, %arg1 : i32, i32
  }
}

</mosaic_0001>

<llo_original>
// kernel: tpu_custom_call.1
$region0: #{tpu_custom_call.1}
  #allocation0 [shape = 'u32[]', space=smem, size = 0x4, offset = 0x4, fixed_abs, tag = 'smem constant byte address 0x4 - core index']
  #allocation1 [shape = 'u32[144,128]{1,0:T(1,128)}', space=vmem, size = 0x12000, scoped, tag = 'internal scratch']
  #allocation2 [shape = 'f32[16,32]{1,0:T(8,128)}', space=vmem, size = 0x2000, scoped, tag = 'scratch operand']
  #allocation3 [shape = 'f32[16,8]{1,0:T(8,128)}', space=vmem, size = 0x2000, scoped, tag = 'scratch operand']
  %s0 = inlined_call_operand.hbm [shape: f32[16,32], index: 0, kind: input, shape index: {}]
  %s1 = inlined_call_operand.vmem [shape: f32[32,64], index: 1, kind: input, shape index: {}]
  %s2 = inlined_call_operand.vmem [shape: f32[32,8], index: 2, kind: input, shape index: {}]
  %s3 = inlined_call_operand.vmem [shape: f32[8,64], index: 3, kind: input, shape index: {}]
  %s4 = inlined_call_operand.hbm [shape: f32[16,64], index: 4, kind: output, shape index: {}]
  %s5 = sld [smem:[#allocation0]]
  $region34: #{tpu_custom_call.1} parent=0
    _
  %s7 = ssub.s32 1, %s5
  %s8 = scalar_select 0, %s7, %s5
  $region1: #{tpu_custom_call.1} parent=0
    #allocation4 [shape = 'u8[8192]{0}', space=vmem, size = 0x2000, scoped, tag = 'input window, operand 0, single buffered']
    #allocation5 [shape = 's32[1]{0}', space=sflag, size = 0x4, scoped, tag = 'scoped memory for tpu_custom_call.1']
    #allocation6 [shape = 's32[1]{0}', space=sflag, size = 0x4, scoped, tag = 'scoped memory for tpu_custom_call.1']
    #allocation7 [shape = 'u8[8192]{0}', space=vmem, size = 0x2000, scoped, tag = 'output window, operand 0, single buffered']
    %9 = vsyncpa [#allocation5], 0
    %10 = vsyncpa [#allocation6], 0
    // Predicated region
    $region2: #{tpu_custom_call.1} parent=1 // pred_check
      _
    $region3: #{tpu_custom_call.1} parent=1 // pred_check_branch
      %12 = sbr.rel (0) target = $region5
    $region4: #{tpu_custom_call.1} parent=1 // pred_region
      %s14 = ssub.s32 256, 256
      %15 = vsyncadd [#allocation5], %s14
      %s16 = sshll.u32 [#allocation4], 4
      %s17 = int_to_ptr.vmem [resolvable:$true] %s16
      %22 = dma.hbm_to_vmem [thread:$0]  %s0, 256, %s17, [#allocation5], 128, 128, 8
    $region5: #{tpu_custom_call.1} parent=1 // pred_fallthru
      _
    // Predicated region
    $region6: #{tpu_custom_call.1} parent=1 // pred_check
      _
    $region7: #{tpu_custom_call.1} parent=1 // pred_check_branch
      %24 = sbr.rel (0) target = $region9
    $region8: #{tpu_custom_call.1} parent=1 // pred_region
      _
    $region9: #{tpu_custom_call.1} parent=1 // pred_fallthru
      _
    // Predicated region
    $region10: #{tpu_custom_call.1} parent=1 // pred_check
      _
    $region11: #{tpu_custom_call.1} parent=1 // pred_check_branch
      %26 = sbr.rel (0) target = $region13
    $region12: #{tpu_custom_call.1} parent=1 // pred_region
      _
    $region13: #{tpu_custom_call.1} parent=1 // pred_fallthru
      _
    // Predicated region
    $region14: #{tpu_custom_call.1} parent=1 // pred_check
      _
    $region15: #{tpu_custom_call.1} parent=1 // pred_check_branch
      %28 = sbr.rel (0) target = $region17
    $region16: #{tpu_custom_call.1} parent=1 // pred_region
      _
    $region17: #{tpu_custom_call.1} parent=1 // pred_fallthru
      _
    // Predicated region
    $region18: #{tpu_custom_call.1} parent=1 // pred_check
      _
    $region19: #{tpu_custom_call.1} parent=1 // pred_check_branch
      %30 = sbr.rel (0) target = $region21
    $region20: #{tpu_custom_call.1} parent=1 // pred_region
      %31 = dma.done [#allocation5], 256
    $region21: #{tpu_custom_call.1} parent=1 // pred_fallthru
      _
    %p32 = scmp.eq.s32.totalorder 0, 0
    // Predicated region
    $region22: #{tpu_custom_call.1} parent=1 // pred_check
      %p33 = pneg %p32
    $region23: #{tpu_custom_call.1} parent=1 // pred_check_branch
      %35 = sbr.rel (%p33) target = $region25
    $region24: #{tpu_custom_call.1} parent=1 // pred_region
      %v36 = vld [vmem:[#allocation4] sm:$0xff]
      %v37 = vld [vmem:[#allocation4 + $0x8] sm:$0xff]
      %vm38 = vcmask 261120
      %v39 = vsel %vm38, %v36, inf
      %40 = vmin.xlane.f32.xlu0 %v39
      %v41 = vpop.xlane.xlu0 %40
      %v42 = vsel %vm38, %v37, inf
      %43 = vmin.xlane.f32.xlu0 %v42
      %v44 = vpop.xlane.xlu0 %43
      %v45 = vmin.f32 %v41, 0.0
      %v46 = vmin.f32 %v44, 0.0
      %v47 = vsel %vm38, %v36, -inf
      %48 = vmax.xlane.f32.xlu0 %v47
      %v49 = vpop.xlane.xlu0 %48
      %v50 = vsel %vm38, %v37, -inf
      %51 = vmax.xlane.f32.xlu0 %v50
      %v52 = vpop.xlane.xlu0 %51
      %v53 = vmax.f32 %v49, 0.0
      %v54 = vmax.f32 %v52, 0.0
      %v55 = vsub.f32 %v53, %v45
      %v56 = vsub.f32 %v54, %v46
      %v57 = vrcp.pop 255.0
      %v58 = vmul.f32 %v55, %v57
      %v59 = vmul.f32 %v56, %v57
      %v60 = vmax.f32 %v58, 1.1920929e-07
      %v61 = vmax.f32 %v59, 1.1920929e-07
      %v62 = vrcp.pop %v60
      %v63 = vmul.f32 %v45, %v62
      %v64 = vrcp.pop %v61
      %v65 = vmul.f32 %v46, %v64
      %v66 = vround.ne.pseudo %v63
      %v67 = vround.ne.pseudo %v65
      %v68 = vsub.f32 -128.0, %v66
      %v69 = vsub.f32 -128.0, %v67
      %v70 = vmax.f32 %v68, -128.0
      %v71 = vmax.f32 %v69, -128.0
      %v72 = vmin.f32 %v70, 127.0
      %v73 = vmin.f32 %v71, 127.0
      %v74 = vmul.f32 %v36, %v62
      %v75 = vmul.f32 %v37, %v64
      %v76 = vround.ne.pseudo %v74
      %v77 = vround.ne.pseudo %v75
      %v78 = vadd.f32 %v76, %v72
      %v79 = vadd.f32 %v77, %v73
      %v80 = vmax.f32 %v78, -128.0
      %v81 = vmax.f32 %v79, -128.0
      %v82 = vmin.f32 %v80, 127.0
      %v83 = vmin.f32 %v81, 127.0
      %v84 = vsub.f32 %v82, %v72
      %v85 = vsub.f32 %v83, %v73
      %v86 = vmul.f32 %v84, %v60
      %v87 = vmul.f32 %v85, %v61
      %88 = vst.msk [vmem:[#allocation2] sm:$0xff] %vm38, %v86
      %89 = vst.msk [vmem:[#allocation2 + $0x8] sm:$0xff] %vm38, %v87
      %v90 = vld [vmem:[%s2] sm:$0xff]
      %v91 = vld [vmem:[%s2 + $0x8] sm:$0xff]
      %v92 = vld [vmem:[%s2 + $0x10] sm:$0xff]
      %v93 = vld [vmem:[%s2 + $0x18] sm:$0xff]
      %v95 = vsel %vm38, %v36, 0
      %v98 = vsel %vm38, %v37, 0
      %100 = vmatprep.subr.mxu0 0.0
      %101 = vmatpush1.msra.mxu0 0.0
      %102 = vmatprep.subr.mxu0 0.0
      %103 = vmatpush1.msra.mxu0 0.0
      %104 = vmatprep.subr.mxu0 0.0
      %105 = vmatpush1.msra.mxu0 0.0
      %106 = vmatprep.subr.mxu0 0.0
      %107 = vmatpush1.msra.mxu0 0.0
      %108 = vmatprep.subr.mxu0 0.0
      %109 = vmatpush1.msra.mxu0 0.0
      %110 = vmatprep.subr.mxu0 0.0
      %111 = vmatpush1.msra.mxu0 0.0
      %112 = vmatprep.subr.mxu0 0.0
      %113 = vmatpush1.msra.mxu0 0.0
      %114 = vmatprep.subr.mxu0 0.0
      %115 = vmatpush1.msra.mxu0 0.0
      %116 = vmatprep.subr.mxu0 0.0
      %117 = vmatpush1.msra.mxu0 0.0
      %118 = vmatprep.subr.mxu0 0.0
      %119 = vmatpush1.msra.mxu0 0.0
      %120 = vmatprep.subr.mxu0 0.0
      %121 = vmatpush1.msra.mxu0 0.0
      %122 = vmatprep.subr.mxu0 0.0
      %123 = vmatpush1.msra.mxu0 0.0
      %124 = vmatprep.subr.mxu0 0.0
      %v125 = vand.u32 %v93, 4294901760
      %126 = vmatpush1.msra.mxu0 %v125
      %127 = vmatprep.subr.mxu0 0.0
      %v128 = vand.u32 %v92, 4294901760
      %129 = vmatpush1.msra.mxu0 %v128
      %130 = vmatprep.subr.mxu0 0.0
      %v131 = vand.u32 %v91, 4294901760
      %132 = vmatpush1.msra.mxu0 %v131
      %133 = vmatprep.subr.mxu0 0.0
      %v134 = vand.u32 %v90, 4294901760
      %135 = vmatpush1.msra.mxu0 %v134
      %136 = vmatprep.subr.mxu0 0.0
      %137 = vmatpush2.msra.mxu0 0.0
      %138 = vmatprep.subr.mxu0 0.0
      %139 = vmatpush2.msra.mxu0 0.0
      %140 = vmatprep.subr.mxu0 0.0
      %141 = vmatpush2.msra.mxu0 0.0
      %142 = vmatprep.subr.mxu0 0.0
      %143 = vmatpush2.msra.mxu0 0.0
      %144 = vmatprep.subr.mxu0 0.0
      %145 = vmatpush2.msra.mxu0 0.0
      %146 = vmatprep.subr.mxu0 0.0
      %147 = vmatpush2.msra.mxu0 0.0
      %148 = vmatprep.subr.mxu0 0.0
      %149 = vmatpush2.msra.mxu0 0.0
      %150 = vmatprep.subr.mxu0 0.0
      %151 = vmatpush2.msra.mxu0 0.0
      %152 = vmatprep.subr.mxu0 0.0
      %153 = vmatpush2.msra.mxu0 0.0
      %154 = vmatprep.subr.mxu0 0.0
      %155 = vmatpush2.msra.mxu0 0.0
      %156 = vmatprep.subr.mxu0 0.0
      %157 = vmatpush2.msra.mxu0 0.0
      %158 = vmatprep.subr.mxu0 0.0
      %159 = vmatpush2.msra.mxu0 0.0
      %160 = vmatprep.subr.mxu0 0.0
      %161 = vmatpush2.msra.mxu0 0.0
      %162 = vmatprep.subr.mxu0 0.0
      %163 = vmatpush2.msra.mxu0 0.0
      %164 = vmatprep.subr.mxu0 0.0
      %165 = vmatpush2.msra.mxu0 0.0
      %166 = vmatprep.subr.mxu0 0.0
      %167 = vmatpush2.msra.mxu0 0.0
      %168 = vmatprep.mubr.f32.mxu0 0.0
      %v169 = vand.u32 %v95, 4294901760
      %v170 = vsub.f32 %v95, %v169
      %v171 = vand.u32 %v170, 4294901760
      %v172 = vsub.f32 %v170, %v171
      %v173 = vand.u32 %v172, 4294901760
      %174 = vmatmul.mubr.f32.gmra.mxu0 %v173
      %v175 = vpop.f32.mrf.mxu0
      %v176 = vadd.f32 0.0, %v175
      %v177 = vpop.f32.mrf.mxu0
      %178 = vmatprep.mubr.f32.mxu0 0.0
      %v179 = vand.u32 %v98, 4294901760
      %v180 = vsub.f32 %v98, %v179
      %v181 = vand.u32 %v180, 4294901760
      %v182 = vsub.f32 %v180, %v181
      %v183 = vand.u32 %v182, 4294901760
      %184 = vmatmul.mubr.f32.gmra.mxu0 %v183
      %v185 = vpop.f32.mrf.mxu0
      %v186 = vadd.f32 0.0, %v185
      %v187 = vpop.f32.mrf.mxu0
      %188 = vdwg.mxu0
      %189 = vmatprep.subr.mxu0 0.0
      %190 = vmatpush1.msra.mxu0 0.0
      %191 = vmatprep.subr.mxu0 0.0
      %192 = vmatpush1.msra.mxu0 0.0
      %193 = vmatprep.subr.mxu0 0.0
      %194 = vmatpush1.msra.mxu0 0.0
      %195 = vmatprep.subr.mxu0 0.0
      %196 = vmatpush1.msra.mxu0 0.0
      %197 = vmatprep.subr.mxu0 0.0
      %198 = vmatpush1.msra.mxu0 0.0
      %199 = vmatprep.subr.mxu0 0.0
      %200 = vmatpush1.msra.mxu0 0.0
      %201 = vmatprep.subr.mxu0 0.0
      %202 = vmatpush1.msra.mxu0 0.0
      %203 = vmatprep.subr.mxu0 0.0
      %204 = vmatpush1.msra.mxu0 0.0
      %205 = vmatprep.subr.mxu0 0.0
      %206 = vmatpush1.msra.mxu0 0.0
      %207 = vmatprep.subr.mxu0 0.0
      %208 = vmatpush1.msra.mxu0 0.0
      %209 = vmatprep.subr.mxu0 0.0
      %210 = vmatpush1.msra.mxu0 0.0
      %211 = vmatprep.subr.mxu0 0.0
      %212 = vmatpush1.msra.mxu0 0.0
      %213 = vmatprep.subr.mxu0 0.0
      %v214 = vand.u32 %v93, 4294901760
      %v215 = vsub.f32 %v93, %v214
      %v216 = vand.u32 %v215, 4294901760
      %v217 = vsub.f32 %v215, %v216
      %v218 = vand.u32 %v217, 4294901760
      %219 = vmatpush1.msra.mxu0 %v218
      %220 = vmatprep.subr.mxu0 0.0
      %v221 = vand.u32 %v92, 4294901760
      %v222 = vsub.f32 %v92, %v221
      %v223 = vand.u32 %v222, 4294901760
      %v224 = vsub.f32 %v222, %v223
      %v225 = vand.u32 %v224, 4294901760
      %226 = vmatpush1.msra.mxu0 %v225
      %227 = vmatprep.subr.mxu0 0.0
      %v228 = vand.u32 %v91, 4294901760
      %v229 = vsub.f32 %v91, %v228
      %v230 = vand.u32 %v229, 4294901760
      %v231 = vsub.f32 %v229, %v230
      %v232 = vand.u32 %v231, 4294901760
      %233 = vmatpush1.msra.mxu0 %v232
      %234 = vmatprep.subr.mxu0 0.0
      %v235 = vand.u32 %v90, 4294901760
      %v236 = vsub.f32 %v90, %v235
      %v237 = vand.u32 %v236, 4294901760
      %v238 = vsub.f32 %v236, %v237
      %v239 = vand.u32 %v238, 4294901760
      %240 = vmatpush1.msra.mxu0 %v239
      %241 = vmatprep.subr.mxu0 0.0
      %242 = vmatpush2.msra.mxu0 0.0
      %243 = vmatprep.subr.mxu0 0.0
      %244 = vmatpush2.msra.mxu0 0.0
      %245 = vmatprep.subr.mxu0 0.0
      %246 = vmatpush2.msra.mxu0 0.0
      %247 = vmatprep.subr.mxu0 0.0
      %248 = vmatpush2.msra.mxu0 0.0
      %249 = vmatprep.subr.mxu0 0.0
      %250 = vmatpush2.msra.mxu0 0.0
      %251 = vmatprep.subr.mxu0 0.0
      %252 = vmatpush2.msra.mxu0 0.0
      %253 = vmatprep.subr.mxu0 0.0
      %254 = vmatpush2.msra.mxu0 0.0
      %255 = vmatprep.subr.mxu0 0.0
      %256 = vmatpush2.msra.mxu0 0.0
      %257 = vmatprep.subr.mxu0 0.0
      %258 = vmatpush2.msra.mxu0 0.0
      %259 = vmatprep.subr.mxu0 0.0
      %260 = vmatpush2.msra.mxu0 0.0
      %261 = vmatprep.subr.mxu0 0.0
      %262 = vmatpush2.msra.mxu0 0.0
      %263 = vmatprep.subr.mxu0 0.0
      %264 = vmatpush2.msra.mxu0 0.0
      %265 = vmatprep.subr.mxu0 0.0
      %266 = vmatpush2.msra.mxu0 0.0
      %267 = vmatprep.subr.mxu0 0.0
      %268 = vmatpush2.msra.mxu0 0.0
      %269 = vmatprep.subr.mxu0 0.0
      %270 = vmatpush2.msra.mxu0 0.0
      %271 = vmatprep.subr.mxu0 0.0
      %272 = vmatpush2.msra.mxu0 0.0
      %273 = vmatprep.mubr.f32.mxu0 0.0
      %v274 = vand.u32 %v95, 4294901760
      %275 = vmatmul.mubr.f32.gmra.mxu0 %v274
      %v276 = vpop.f32.mrf.mxu0
      %v277 = vadd.f32 %v176, %v276
      %v278 = vpop.f32.mrf.mxu0
      %279 = vmatprep.mubr.f32.mxu0 0.0
      %v280 = vand.u32 %v98, 4294901760
      %281 = vmatmul.mubr.f32.gmra.mxu0 %v280
      %v282 = vpop.f32.mrf.mxu0
      %v283 = vadd.f32 %v186, %v282
      %v284 = vpop.f32.mrf.mxu0
      %285 = vdwg.mxu0
      %286 = vmatprep.subr.mxu0 0.0
      %287 = vmatpush1.msra.mxu0 0.0
      %288 = vmatprep.subr.mxu0 0.0
      %289 = vmatpush1.msra.mxu0 0.0
      %290 = vmatprep.subr.mxu0 0.0
      %291 = vmatpush1.msra.mxu0 0.0
      %292 = vmatprep.subr.mxu0 0.0
      %293 = vmatpush1.msra.mxu0 0.0
      %294 = vmatprep.subr.mxu0 0.0
      %295 = vmatpush1.msra.mxu0 0.0
      %296 = vmatprep.subr.mxu0 0.0
      %297 = vmatpush1.msra.mxu0 0.0
      %298 = vmatprep.subr.mxu0 0.0
      %299 = vmatpush1.msra.mxu0 0.0
      %300 = vmatprep.subr.mxu0 0.0
      %301 = vmatpush1.msra.mxu0 0.0
      %302 = vmatprep.subr.mxu0 0.0
      %303 = vmatpush1.msra.mxu0 0.0
      %304 = vmatprep.subr.mxu0 0.0
      %305 = vmatpush1.msra.mxu0 0.0
      %306 = vmatprep.subr.mxu0 0.0
      %307 = vmatpush1.msra.mxu0 0.0
      %308 = vmatprep.subr.mxu0 0.0
      %309 = vmatpush1.msra.mxu0 0.0
      %310 = vmatprep.subr.mxu0 0.0
      %v311 = vand.u32 %v93, 4294901760
      %v312 = vsub.f32 %v93, %v311
      %313 = vmatpush1.msra.mxu0 %v312
      %314 = vmatprep.subr.mxu0 0.0
      %v315 = vand.u32 %v92, 4294901760
      %v316 = vsub.f32 %v92, %v315
      %317 = vmatpush1.msra.mxu0 %v316
      %318 = vmatprep.subr.mxu0 0.0
      %v319 = vand.u32 %v91, 4294901760
      %v320 = vsub.f32 %v91, %v319
      %321 = vmatpush1.msra.mxu0 %v320
      %322 = vmatprep.subr.mxu0 0.0
      %v323 = vand.u32 %v90, 4294901760
      %v324 = vsub.f32 %v90, %v323
      %325 = vmatpush1.msra.mxu0 %v324
      %326 = vmatprep.subr.mxu0 0.0
      %327 = vmatpush2.msra.mxu0 0.0
      %328 = vmatprep.subr.mxu0 0.0
      %329 = vmatpush2.msra.mxu0 0.0
      %330 = vmatprep.subr.mxu0 0.0
      %331 = vmatpush2.msra.mxu0 0.0
      %332 = vmatprep.subr.mxu0 0.0
      %333 = vmatpush2.msra.mxu0 0.0
      %334 = vmatprep.subr.mxu0 0.0
      %335 = vmatpush2.msra.mxu0 0.0
      %336 = vmatprep.subr.mxu0 0.0
      %337 = vmatpush2.msra.mxu0 0.0
      %338 = vmatprep.subr.mxu0 0.0
      %339 = vmatpush2.msra.mxu0 0.0
      %340 = vmatprep.subr.mxu0 0.0
      %341 = vmatpush2.msra.mxu0 0.0
      %342 = vmatprep.subr.mxu0 0.0
      %343 = vmatpush2.msra.mxu0 0.0
      %344 = vmatprep.subr.mxu0 0.0
      %345 = vmatpush2.msra.mxu0 0.0
      %346 = vmatprep.subr.mxu0 0.0
      %347 = vmatpush2.msra.mxu0 0.0
      %348 = vmatprep.subr.mxu0 0.0
      %349 = vmatpush2.msra.mxu0 0.0
      %350 = vmatprep.subr.mxu0 0.0
      %351 = vmatpush2.msra.mxu0 0.0
      %352 = vmatprep.subr.mxu0 0.0
      %353 = vmatpush2.msra.mxu0 0.0
      %354 = vmatprep.subr.mxu0 0.0
      %355 = vmatpush2.msra.mxu0 0.0
      %356 = vmatprep.subr.mxu0 0.0
      %357 = vmatpush2.msra.mxu0 0.0
      %358 = vmatprep.mubr.f32.mxu0 0.0
      %v359 = vand.u32 %v95, 4294901760
      %v360 = vsub.f32 %v95, %v359
      %361 = vmatmul.mubr.f32.gmra.mxu0 %v360
      %v362 = vpop.f32.mrf.mxu0
      %v363 = vadd.f32 %v277, %v362
      %v364 = vpop.f32.mrf.mxu0
      %365 = vmatprep.mubr.f32.mxu0 0.0
      %v366 = vand.u32 %v98, 4294901760
      %v367 = vsub.f32 %v98, %v366
      %368 = vmatmul.mubr.f32.gmra.mxu0 %v367
      %v369 = vpop.f32.mrf.mxu0
      %v370 = vadd.f32 %v283, %v369
      %v371 = vpop.f32.mrf.mxu0
      %372 = vdwg.mxu0
      %373 = vmatprep.subr.mxu0 0.0
      %374 = vmatpush1.msra.mxu0 0.0
      %375 = vmatprep.subr.mxu0 0.0
      %376 = vmatpush1.msra.mxu0 0.0
      %377 = vmatprep.subr.mxu0 0.0
      %378 = vmatpush1.msra.mxu0 0.0
      %379 = vmatprep.subr.mxu0 0.0
      %380 = vmatpush1.msra.mxu0 0.0
      %381 = vmatprep.subr.mxu0 0.0
      %382 = vmatpush1.msra.mxu0 0.0
      %383 = vmatprep.subr.mxu0 0.0
      %384 = vmatpush1.msra.mxu0 0.0
      %385 = vmatprep.subr.mxu0 0.0
      %386 = vmatpush1.msra.mxu0 0.0
      %387 = vmatprep.subr.mxu0 0.0
      %388 = vmatpush1.msra.mxu0 0.0
      %389 = vmatprep.subr.mxu0 0.0
      %390 = vmatpush1.msra.mxu0 0.0
      %391 = vmatprep.subr.mxu0 0.0
      %392 = vmatpush1.msra.mxu0 0.0
      %393 = vmatprep.subr.mxu0 0.0
      %394 = vmatpush1.msra.mxu0 0.0
      %395 = vmatprep.subr.mxu0 0.0
      %396 = vmatpush1.msra.mxu0 0.0
      %397 = vmatprep.subr.mxu0 0.0
      %v398 = vand.u32 %v93, 4294901760
      %399 = vmatpush1.msra.mxu0 %v398
      %400 = vmatprep.subr.mxu0 0.0
      %v401 = vand.u32 %v92, 4294901760
      %402 = vmatpush1.msra.mxu0 %v401
      %403 = vmatprep.subr.mxu0 0.0
      %v404 = vand.u32 %v91, 4294901760
      %405 = vmatpush1.msra.mxu0 %v404
      %406 = vmatprep.subr.mxu0 0.0
      %v407 = vand.u32 %v90, 4294901760
      %408 = vmatpush1.msra.mxu0 %v407
      %409 = vmatprep.subr.mxu0 0.0
      %410 = vmatpush2.msra.mxu0 0.0
      %411 = vmatprep.subr.mxu0 0.0
      %412 = vmatpush2.msra.mxu0 0.0
      %413 = vmatprep.subr.mxu0 0.0
      %414 = vmatpush2.msra.mxu0 0.0
      %415 = vmatprep.subr.mxu0 0.0
      %416 = vmatpush2.msra.mxu0 0.0
      %417 = vmatprep.subr.mxu0 0.0
      %418 = vmatpush2.msra.mxu0 0.0
      %419 = vmatprep.subr.mxu0 0.0
      %420 = vmatpush2.msra.mxu0 0.0
      %421 = vmatprep.subr.mxu0 0.0
      %422 = vmatpush2.msra.mxu0 0.0
      %423 = vmatprep.subr.mxu0 0.0
      %424 = vmatpush2.msra.mxu0 0.0
      %425 = vmatprep.subr.mxu0 0.0
      %426 = vmatpush2.msra.mxu0 0.0
      %427 = vmatprep.subr.mxu0 0.0
      %428 = vmatpush2.msra.mxu0 0.0
      %429 = vmatprep.subr.mxu0 0.0
      %430 = vmatpush2.msra.mxu0 0.0
      %431 = vmatprep.subr.mxu0 0.0
      %432 = vmatpush2.msra.mxu0 0.0
      %433 = vmatprep.subr.mxu0 0.0
      %434 = vmatpush2.msra.mxu0 0.0
      %435 = vmatprep.subr.mxu0 0.0
      %436 = vmatpush2.msra.mxu0 0.0
      %437 = vmatprep.subr.mxu0 0.0
      %438 = vmatpush2.msra.mxu0 0.0
      %439 = vmatprep.subr.mxu0 0.0
      %440 = vmatpush2.msra.mxu0 0.0
      %441 = vmatprep.mubr.f32.mxu0 0.0
      %v442 = vand.u32 %v95, 4294901760
      %v443 = vsub.f32 %v95, %v442
      %v444 = vand.u32 %v443, 4294901760
      %445 = vmatmul.mubr.f32.gmra.mxu0 %v444
      %v446 = vpop.f32.mrf.mxu0
      %v447 = vadd.f32 %v363, %v446
      %v448 = vpop.f32.mrf.mxu0
      %449 = vmatprep.mubr.f32.mxu0 0.0
      %v450 = vand.u32 %v98, 4294901760
      %v451 = vsub.f32 %v98, %v450
      %v452 = vand.u32 %v451, 4294901760
      %453 = vmatmul.mubr.f32.gmra.mxu0 %v452
      %v454 = vpop.f32.mrf.mxu0
      %v455 = vadd.f32 %v370, %v454
      %v456 = vpop.f32.mrf.mxu0
      %457 = vdwg.mxu0
      %458 = vmatprep.subr.mxu0 0.0
      %459 = vmatpush1.msra.mxu0 0.0
      %460 = vmatprep.subr.mxu0 0.0
      %461 = vmatpush1.msra.mxu0 0.0
      %462 = vmatprep.subr.mxu0 0.0
      %463 = vmatpush1.msra.mxu0 0.0
      %464 = vmatprep.subr.mxu0 0.0
      %465 = vmatpush1.msra.mxu0 0.0
      %466 = vmatprep.subr.mxu0 0.0
      %467 = vmatpush1.msra.mxu0 0.0
      %468 = vmatprep.subr.mxu0 0.0
      %469 = vmatpush1.msra.mxu0 0.0
      %470 = vmatprep.subr.mxu0 0.0
      %471 = vmatpush1.msra.mxu0 0.0
      %472 = vmatprep.subr.mxu0 0.0
      %473 = vmatpush1.msra.mxu0 0.0
      %474 = vmatprep.subr.mxu0 0.0
      %475 = vmatpush1.msra.mxu0 0.0
      %476 = vmatprep.subr.mxu0 0.0
      %477 = vmatpush1.msra.mxu0 0.0
      %478 = vmatprep.subr.mxu0 0.0
      %479 = vmatpush1.msra.mxu0 0.0
      %480 = vmatprep.subr.mxu0 0.0
      %481 = vmatpush1.msra.mxu0 0.0
      %482 = vmatprep.subr.mxu0 0.0
      %v483 = vand.u32 %v93, 4294901760
      %v484 = vsub.f32 %v93, %v483
      %v485 = vand.u32 %v484, 4294901760
      %486 = vmatpush1.msra.mxu0 %v485
      %487 = vmatprep.subr.mxu0 0.0
      %v488 = vand.u32 %v92, 4294901760
      %v489 = vsub.f32 %v92, %v488
      %v490 = vand.u32 %v489, 4294901760
      %491 = vmatpush1.msra.mxu0 %v490
      %492 = vmatprep.subr.mxu0 0.0
      %v493 = vand.u32 %v91, 4294901760
      %v494 = vsub.f32 %v91, %v493
      %v495 = vand.u32 %v494, 4294901760
      %496 = vmatpush1.msra.mxu0 %v495
      %497 = vmatprep.subr.mxu0 0.0
      %v498 = vand.u32 %v90, 4294901760
      %v499 = vsub.f32 %v90, %v498
      %v500 = vand.u32 %v499, 4294901760
      %501 = vmatpush1.msra.mxu0 %v500
      %502 = vmatprep.subr.mxu0 0.0
      %503 = vmatpush2.msra.mxu0 0.0
      %504 = vmatprep.subr.mxu0 0.0
      %505 = vmatpush2.msra.mxu0 0.0
      %506 = vmatprep.subr.mxu0 0.0
      %507 = vmatpush2.msra.mxu0 0.0
      %508 = vmatprep.subr.mxu0 0.0
      %509 = vmatpush2.msra.mxu0 0.0
      %510 = vmatprep.subr.mxu0 0.0
      %511 = vmatpush2.msra.mxu0 0.0
      %512 = vmatprep.subr.mxu0 0.0
      %513 = vmatpush2.msra.mxu0 0.0
      %514 = vmatprep.subr.mxu0 0.0
      %515 = vmatpush2.msra.mxu0 0.0
      %516 = vmatprep.subr.mxu0 0.0
      %517 = vmatpush2.msra.mxu0 0.0
      %518 = vmatprep.subr.mxu0 0.0
      %519 = vmatpush2.msra.mxu0 0.0
      %520 = vmatprep.subr.mxu0 0.0
      %521 = vmatpush2.msra.mxu0 0.0
      %522 = vmatprep.subr.mxu0 0.0
      %523 = vmatpush2.msra.mxu0 0.0
      %524 = vmatprep.subr.mxu0 0.0
      %525 = vmatpush2.msra.mxu0 0.0
      %526 = vmatprep.subr.mxu0 0.0
      %527 = vmatpush2.msra.mxu0 0.0
      %528 = vmatprep.subr.mxu0 0.0
      %529 = vmatpush2.msra.mxu0 0.0
      %530 = vmatprep.subr.mxu0 0.0
      %531 = vmatpush2.msra.mxu0 0.0
      %532 = vmatprep.subr.mxu0 0.0
      %533 = vmatpush2.msra.mxu0 0.0
      %534 = vmatprep.mubr.f32.mxu0 0.0
      %v535 = vand.u32 %v95, 4294901760
      %536 = vmatmul.mubr.f32.gmra.mxu0 %v535
      %v537 = vpop.f32.mrf.mxu0
      %v538 = vadd.f32 %v447, %v537
      %v539 = vpop.f32.mrf.mxu0
      %540 = vmatprep.mubr.f32.mxu0 0.0
      %v541 = vand.u32 %v98, 4294901760
      %542 = vmatmul.mubr.f32.gmra.mxu0 %v541
      %v543 = vpop.f32.mrf.mxu0
      %v544 = vadd.f32 %v455, %v543
      %v545 = vpop.f32.mrf.mxu0
      %546 = vdwg.mxu0
      %547 = vmatprep.subr.mxu0 0.0
      %548 = vmatpush1.msra.mxu0 0.0
      %549 = vmatprep.subr.mxu0 0.0
      %550 = vmatpush1.msra.mxu0 0.0
      %551 = vmatprep.subr.mxu0 0.0
      %552 = vmatpush1.msra.mxu0 0.0
      %553 = vmatprep.subr.mxu0 0.0
      %554 = vmatpush1.msra.mxu0 0.0
      %555 = vmatprep.subr.mxu0 0.0
      %556 = vmatpush1.msra.mxu0 0.0
      %557 = vmatprep.subr.mxu0 0.0
      %558 = vmatpush1.msra.mxu0 0.0
      %559 = vmatprep.subr.mxu0 0.0
      %560 = vmatpush1.msra.mxu0 0.0
      %561 = vmatprep.subr.mxu0 0.0
      %562 = vmatpush1.msra.mxu0 0.0
      %563 = vmatprep.subr.mxu0 0.0
      %564 = vmatpush1.msra.mxu0 0.0
      %565 = vmatprep.subr.mxu0 0.0
      %566 = vmatpush1.msra.mxu0 0.0
      %567 = vmatprep.subr.mxu0 0.0
      %568 = vmatpush1.msra.mxu0 0.0
      %569 = vmatprep.subr.mxu0 0.0
      %570 = vmatpush1.msra.mxu0 0.0
      %571 = vmatprep.subr.mxu0 0.0
      %v572 = vand.u32 %v93, 4294901760
      %573 = vmatpush1.msra.mxu0 %v572
      %574 = vmatprep.subr.mxu0 0.0
      %v575 = vand.u32 %v92, 4294901760
      %576 = vmatpush1.msra.mxu0 %v575
      %577 = vmatprep.subr.mxu0 0.0
      %v578 = vand.u32 %v91, 4294901760
      %579 = vmatpush1.msra.mxu0 %v578
      %580 = vmatprep.subr.mxu0 0.0
      %v581 = vand.u32 %v90, 4294901760
      %582 = vmatpush1.msra.mxu0 %v581
      %583 = vmatprep.subr.mxu0 0.0
      %584 = vmatpush2.msra.mxu0 0.0
      %585 = vmatprep.subr.mxu0 0.0
      %586 = vmatpush2.msra.mxu0 0.0
      %587 = vmatprep.subr.mxu0 0.0
      %588 = vmatpush2.msra.mxu0 0.0
      %589 = vmatprep.subr.mxu0 0.0
      %590 = vmatpush2.msra.mxu0 0.0
      %591 = vmatprep.subr.mxu0 0.0
      %592 = vmatpush2.msra.mxu0 0.0
      %593 = vmatprep.subr.mxu0 0.0
      %594 = vmatpush2.msra.mxu0 0.0
      %595 = vmatprep.subr.mxu0 0.0
      %596 = vmatpush2.msra.mxu0 0.0
      %597 = vmatprep.subr.mxu0 0.0
      %598 = vmatpush2.msra.mxu0 0.0
      %599 = vmatprep.subr.mxu0 0.0
      %600 = vmatpush2.msra.mxu0 0.0
      %601 = vmatprep.subr.mxu0 0.0
      %602 = vmatpush2.msra.mxu0 0.0
      %603 = vmatprep.subr.mxu0 0.0
      %604 = vmatpush2.msra.mxu0 0.0
      %605 = vmatprep.subr.mxu0 0.0
      %606 = vmatpush2.msra.mxu0 0.0
      %607 = vmatprep.subr.mxu0 0.0
      %608 = vmatpush2.msra.mxu0 0.0
      %609 = vmatprep.subr.mxu0 0.0
      %610 = vmatpush2.msra.mxu0 0.0
      %611 = vmatprep.subr.mxu0 0.0
      %612 = vmatpush2.msra.mxu0 0.0
      %613 = vmatprep.subr.mxu0 0.0
      %614 = vmatpush2.msra.mxu0 0.0
      %615 = vmatprep.mubr.f32.mxu0 0.0
      %v616 = vand.u32 %v95, 4294901760
      %617 = vmatmul.mubr.f32.gmra.mxu0 %v616
      %v618 = vpop.f32.mrf.mxu0
      %v619 = vadd.f32 %v538, %v618
      %v620 = vpop.f32.mrf.mxu0
      %621 = vmatprep.mubr.f32.mxu0 0.0
      %v622 = vand.u32 %v98, 4294901760
      %623 = vmatmul.mubr.f32.gmra.mxu0 %v622
      %v624 = vpop.f32.mrf.mxu0
      %v625 = vadd.f32 %v544, %v624
      %v626 = vpop.f32.mrf.mxu0
      %627 = vdwg.mxu0
      %v628 = vmul.f32 %v619, 2.0
      %v629 = vmul.f32 %v625, 2.0
      %vm630 = vcmask 64512
      %631 = vst.msk [vmem:[#allocation3] sm:$0xff] %vm630, %v628
      %632 = vst.msk [vmem:[#allocation3 + $0x8] sm:$0xff] %vm630, %v629
    $region25: #{tpu_custom_call.1} parent=1 // pred_fallthru
      _
    %v633 = vld [vmem:[#allocation2] sm:$0xff]
    %v634 = vld [vmem:[#allocation2 + $0x8] sm:$0xff]
    %v635 = vld [vmem:[%s1] sm:$0xff]
    %v636 = vld [vmem:[%s1 + $0x8] sm:$0xff]
    %v637 = vld [vmem:[%s1 + $0x10] sm:$0xff]
    %v638 = vld [vmem:[%s1 + $0x18] sm:$0xff]
    %v639 = vld [vmem:[#allocation3] sm:$0xff]
    %v640 = vld [vmem:[#allocation3 + $0x8] sm:$0xff]
    %v641 = vld [vmem:[%s3] sm:$0xff]
    %vm642 = vcmask 64512
    %v644 = vsel %vm642, %v639, 0
    %v647 = vsel %vm642, %v640, 0
    %649 = vmatprep.subr.mxu0 0.0
    %650 = vmatpush1.msra.mxu0 0.0
    %651 = vmatprep.subr.mxu0 0.0
    %652 = vmatpush1.msra.mxu0 0.0
    %653 = vmatprep.subr.mxu0 0.0
    %654 = vmatpush1.msra.mxu0 0.0
    %655 = vmatprep.subr.mxu0 0.0
    %656 = vmatpush1.msra.mxu0 0.0
    %657 = vmatprep.subr.mxu0 0.0
    %658 = vmatpush1.msra.mxu0 0.0
    %659 = vmatprep.subr.mxu0 0.0
    %660 = vmatpush1.msra.mxu0 0.0
    %661 = vmatprep.subr.mxu0 0.0
    %662 = vmatpush1.msra.mxu0 0.0
    %663 = vmatprep.subr.mxu0 0.0
    %664 = vmatpush1.msra.mxu0 0.0
    %665 = vmatprep.subr.mxu0 0.0
    %666 = vmatpush1.msra.mxu0 0.0
    %667 = vmatprep.subr.mxu0 0.0
    %668 = vmatpush1.msra.mxu0 0.0
    %669 = vmatprep.subr.mxu0 0.0
    %670 = vmatpush1.msra.mxu0 0.0
    %671 = vmatprep.subr.mxu0 0.0
    %672 = vmatpush1.msra.mxu0 0.0
    %673 = vmatprep.subr.mxu0 0.0
    %674 = vmatpush1.msra.mxu0 0.0
    %675 = vmatprep.subr.mxu0 0.0
    %676 = vmatpush1.msra.mxu0 0.0
    %677 = vmatprep.subr.mxu0 0.0
    %678 = vmatpush1.msra.mxu0 0.0
    %679 = vmatprep.subr.mxu0 0.0
    %v680 = vand.u32 %v641, 4294901760
    %681 = vmatpush1.msra.mxu0 %v680
    %682 = vmatprep.subr.mxu0 0.0
    %683 = vmatpush2.msra.mxu0 0.0
    %684 = vmatprep.subr.mxu0 0.0
    %685 = vmatpush2.msra.mxu0 0.0
    %686 = vmatprep.subr.mxu0 0.0
    %687 = vmatpush2.msra.mxu0 0.0
    %688 = vmatprep.subr.mxu0 0.0
    %689 = vmatpush2.msra.mxu0 0.0
    %690 = vmatprep.subr.mxu0 0.0
    %691 = vmatpush2.msra.mxu0 0.0
    %692 = vmatprep.subr.mxu0 0.0
    %693 = vmatpush2.msra.mxu0 0.0
    %694 = vmatprep.subr.mxu0 0.0
    %695 = vmatpush2.msra.mxu0 0.0
    %696 = vmatprep.subr.mxu0 0.0
    %697 = vmatpush2.msra.mxu0 0.0
    %698 = vmatprep.subr.mxu0 0.0
    %699 = vmatpush2.msra.mxu0 0.0
    %700 = vmatprep.subr.mxu0 0.0
    %701 = vmatpush2.msra.mxu0 0.0
    %702 = vmatprep.subr.mxu0 0.0
    %703 = vmatpush2.msra.mxu0 0.0
    %704 = vmatprep.subr.mxu0 0.0
    %705 = vmatpush2.msra.mxu0 0.0
    %706 = vmatprep.subr.mxu0 0.0
    %707 = vmatpush2.msra.mxu0 0.0
    %708 = vmatprep.subr.mxu0 0.0
    %709 = vmatpush2.msra.mxu0 0.0
    %710 = vmatprep.subr.mxu0 0.0
    %711 = vmatpush2.msra.mxu0 0.0
    %712 = vmatprep.subr.mxu0 0.0
    %713 = vmatpush2.msra.mxu0 0.0
    %714 = vmatprep.mubr.f32.mxu0 0.0
    %v715 = vand.u32 %v644, 4294901760
    %v716 = vsub.f32 %v644, %v715
    %v717 = vand.u32 %v716, 4294901760
    %v718 = vsub.f32 %v716, %v717
    %v719 = vand.u32 %v718, 4294901760
    %720 = vmatmul.mubr.f32.gmra.mxu0 %v719
    %v721 = vpop.f32.mrf.mxu0
    %v722 = vadd.f32 0.0, %v721
    %v723 = vpop.f32.mrf.mxu0
    %724 = vmatprep.mubr.f32.mxu0 0.0
    %v725 = vand.u32 %v647, 4294901760
    %v726 = vsub.f32 %v647, %v725
    %v727 = vand.u32 %v726, 4294901760
    %v728 = vsub.f32 %v726, %v727
    %v729 = vand.u32 %v728, 4294901760
    %730 = vmatmul.mubr.f32.gmra.mxu0 %v729
    %v731 = vpop.f32.mrf.mxu0
    %v732 = vadd.f32 0.0, %v731
    %v733 = vpop.f32.mrf.mxu0
    %734 = vdwg.mxu0
    %735 = vmatprep.subr.mxu0 0.0
    %736 = vmatpush1.msra.mxu0 0.0
    %737 = vmatprep.subr.mxu0 0.0
    %738 = vmatpush1.msra.mxu0 0.0
    %739 = vmatprep.subr.mxu0 0.0
    %740 = vmatpush1.msra.mxu0 0.0
    %741 = vmatprep.subr.mxu0 0.0
    %742 = vmatpush1.msra.mxu0 0.0
    %743 = vmatprep.subr.mxu0 0.0
    %744 = vmatpush1.msra.mxu0 0.0
    %745 = vmatprep.subr.mxu0 0.0
    %746 = vmatpush1.msra.mxu0 0.0
    %747 = vmatprep.subr.mxu0 0.0
    %748 = vmatpush1.msra.mxu0 0.0
    %749 = vmatprep.subr.mxu0 0.0
    %750 = vmatpush1.msra.mxu0 0.0
    %751 = vmatprep.subr.mxu0 0.0
    %752 = vmatpush1.msra.mxu0 0.0
    %753 = vmatprep.subr.mxu0 0.0
    %754 = vmatpush1.msra.mxu0 0.0
    %755 = vmatprep.subr.mxu0 0.0
    %756 = vmatpush1.msra.mxu0 0.0
    %757 = vmatprep.subr.mxu0 0.0
    %758 = vmatpush1.msra.mxu0 0.0
    %759 = vmatprep.subr.mxu0 0.0
    %760 = vmatpush1.msra.mxu0 0.0
    %761 = vmatprep.subr.mxu0 0.0
    %762 = vmatpush1.msra.mxu0 0.0
    %763 = vmatprep.subr.mxu0 0.0
    %764 = vmatpush1.msra.mxu0 0.0
    %765 = vmatprep.subr.mxu0 0.0
    %v766 = vand.u32 %v641, 4294901760
    %v767 = vsub.f32 %v641, %v766
    %v768 = vand.u32 %v767, 4294901760
    %v769 = vsub.f32 %v767, %v768
    %v770 = vand.u32 %v769, 4294901760
    %771 = vmatpush1.msra.mxu0 %v770
    %772 = vmatprep.subr.mxu0 0.0
    %773 = vmatpush2.msra.mxu0 0.0
    %774 = vmatprep.subr.mxu0 0.0
    %775 = vmatpush2.msra.mxu0 0.0
    %776 = vmatprep.subr.mxu0 0.0
    %777 = vmatpush2.msra.mxu0 0.0
    %778 = vmatprep.subr.mxu0 0.0
    %779 = vmatpush2.msra.mxu0 0.0
    %780 = vmatprep.subr.mxu0 0.0
    %781 = vmatpush2.msra.mxu0 0.0
    %782 = vmatprep.subr.mxu0 0.0
    %783 = vmatpush2.msra.mxu0 0.0
    %784 = vmatprep.subr.mxu0 0.0
    %785 = vmatpush2.msra.mxu0 0.0
    %786 = vmatprep.subr.mxu0 0.0
    %787 = vmatpush2.msra.mxu0 0.0
    %788 = vmatprep.subr.mxu0 0.0
    %789 = vmatpush2.msra.mxu0 0.0
    %790 = vmatprep.subr.mxu0 0.0
    %791 = vmatpush2.msra.mxu0 0.0
    %792 = vmatprep.subr.mxu0 0.0
    %793 = vmatpush2.msra.mxu0 0.0
    %794 = vmatprep.subr.mxu0 0.0
    %795 = vmatpush2.msra.mxu0 0.0
    %796 = vmatprep.subr.mxu0 0.0
    %797 = vmatpush2.msra.mxu0 0.0
    %798 = vmatprep.subr.mxu0 0.0
    %799 = vmatpush2.msra.mxu0 0.0
    %800 = vmatprep.subr.mxu0 0.0
    %801 = vmatpush2.msra.mxu0 0.0
    %802 = vmatprep.subr.mxu0 0.0
    %803 = vmatpush2.msra.mxu0 0.0
    %804 = vmatprep.mubr.f32.mxu0 0.0
    %v805 = vand.u32 %v644, 4294901760
    %806 = vmatmul.mubr.f32.gmra.mxu0 %v805
    %v807 = vpop.f32.mrf.mxu0
    %v808 = vadd.f32 %v722, %v807
    %v809 = vpop.f32.mrf.mxu0
    %810 = vmatprep.mubr.f32.mxu0 0.0
    %v811 = vand.u32 %v647, 4294901760
    %812 = vmatmul.mubr.f32.gmra.mxu0 %v811
    %v813 = vpop.f32.mrf.mxu0
    %v814 = vadd.f32 %v732, %v813
    %v815 = vpop.f32.mrf.mxu0
    %816 = vdwg.mxu0
    %817 = vmatprep.subr.mxu0 0.0
    %818 = vmatpush1.msra.mxu0 0.0
    %819 = vmatprep.subr.mxu0 0.0
    %820 = vmatpush1.msra.mxu0 0.0
    %821 = vmatprep.subr.mxu0 0.0
    %822 = vmatpush1.msra.mxu0 0.0
    %823 = vmatprep.subr.mxu0 0.0
    %824 = vmatpush1.msra.mxu0 0.0
    %825 = vmatprep.subr.mxu0 0.0
    %826 = vmatpush1.msra.mxu0 0.0
    %827 = vmatprep.subr.mxu0 0.0
    %828 = vmatpush1.msra.mxu0 0.0
    %829 = vmatprep.subr.mxu0 0.0
    %830 = vmatpush1.msra.mxu0 0.0
    %831 = vmatprep.subr.mxu0 0.0
    %832 = vmatpush1.msra.mxu0 0.0
    %833 = vmatprep.subr.mxu0 0.0
    %834 = vmatpush1.msra.mxu0 0.0
    %835 = vmatprep.subr.mxu0 0.0
    %836 = vmatpush1.msra.mxu0 0.0
    %837 = vmatprep.subr.mxu0 0.0
    %838 = vmatpush1.msra.mxu0 0.0
    %839 = vmatprep.subr.mxu0 0.0
    %840 = vmatpush1.msra.mxu0 0.0
    %841 = vmatprep.subr.mxu0 0.0
    %842 = vmatpush1.msra.mxu0 0.0
    %843 = vmatprep.subr.mxu0 0.0
    %844 = vmatpush1.msra.mxu0 0.0
    %845 = vmatprep.subr.mxu0 0.0
    %846 = vmatpush1.msra.mxu0 0.0
    %847 = vmatprep.subr.mxu0 0.0
    %v848 = vand.u32 %v641, 4294901760
    %v849 = vsub.f32 %v641, %v848
    %850 = vmatpush1.msra.mxu0 %v849
    %851 = vmatprep.subr.mxu0 0.0
    %852 = vmatpush2.msra.mxu0 0.0
    %853 = vmatprep.subr.mxu0 0.0
    %854 = vmatpush2.msra.mxu0 0.0
    %855 = vmatprep.subr.mxu0 0.0
    %856 = vmatpush2.msra.mxu0 0.0
    %857 = vmatprep.subr.mxu0 0.0
    %858 = vmatpush2.msra.mxu0 0.0
    %859 = vmatprep.subr.mxu0 0.0
    %860 = vmatpush2.msra.mxu0 0.0
    %861 = vmatprep.subr.mxu0 0.0
    %862 = vmatpush2.msra.mxu0 0.0
    %863 = vmatprep.subr.mxu0 0.0
    %864 = vmatpush2.msra.mxu0 0.0
    %865 = vmatprep.subr.mxu0 0.0
    %866 = vmatpush2.msra.mxu0 0.0
    %867 = vmatprep.subr.mxu0 0.0
    %868 = vmatpush2.msra.mxu0 0.0
    %869 = vmatprep.subr.mxu0 0.0
    %870 = vmatpush2.msra.mxu0 0.0
    %871 = vmatprep.subr.mxu0 0.0
    %872 = vmatpush2.msra.mxu0 0.0
    %873 = vmatprep.subr.mxu0 0.0
    %874 = vmatpush2.msra.mxu0 0.0
    %875 = vmatprep.subr.mxu0 0.0
    %876 = vmatpush2.msra.mxu0 0.0
    %877 = vmatprep.subr.mxu0 0.0
    %878 = vmatpush2.msra.mxu0 0.0
    %879 = vmatprep.subr.mxu0 0.0
    %880 = vmatpush2.msra.mxu0 0.0
    %881 = vmatprep.subr.mxu0 0.0
    %882 = vmatpush2.msra.mxu0 0.0
    %883 = vmatprep.mubr.f32.mxu0 0.0
    %v884 = vand.u32 %v644, 4294901760
    %v885 = vsub.f32 %v644, %v884
    %886 = vmatmul.mubr.f32.gmra.mxu0 %v885
    %v887 = vpop.f32.mrf.mxu0
    %v888 = vadd.f32 %v808, %v887
    %v889 = vpop.f32.mrf.mxu0
    %890 = vmatprep.mubr.f32.mxu0 0.0
    %v891 = vand.u32 %v647, 4294901760
    %v892 = vsub.f32 %v647, %v891
    %893 = vmatmul.mubr.f32.gmra.mxu0 %v892
    %v894 = vpop.f32.mrf.mxu0
    %v895 = vadd.f32 %v814, %v894
    %v896 = vpop.f32.mrf.mxu0
    %897 = vdwg.mxu0
    %898 = vmatprep.subr.mxu0 0.0
    %899 = vmatpush1.msra.mxu0 0.0
    %900 = vmatprep.subr.mxu0 0.0
    %901 = vmatpush1.msra.mxu0 0.0
    %902 = vmatprep.subr.mxu0 0.0
    %903 = vmatpush1.msra.mxu0 0.0
    %904 = vmatprep.subr.mxu0 0.0
    %905 = vmatpush1.msra.mxu0 0.0
    %906 = vmatprep.subr.mxu0 0.0
    %907 = vmatpush1.msra.mxu0 0.0
    %908 = vmatprep.subr.mxu0 0.0
    %909 = vmatpush1.msra.mxu0 0.0
    %910 = vmatprep.subr.mxu0 0.0
    %911 = vmatpush1.msra.mxu0 0.0
    %912 = vmatprep.subr.mxu0 0.0
    %913 = vmatpush1.msra.mxu0 0.0
    %914 = vmatprep.subr.mxu0 0.0
    %915 = vmatpush1.msra.mxu0 0.0
    %916 = vmatprep.subr.mxu0 0.0
    %917 = vmatpush1.msra.mxu0 0.0
    %918 = vmatprep.subr.mxu0 0.0
    %919 = vmatpush1.msra.mxu0 0.0
    %920 = vmatprep.subr.mxu0 0.0
    %921 = vmatpush1.msra.mxu0 0.0
    %922 = vmatprep.subr.mxu0 0.0
    %923 = vmatpush1.msra.mxu0 0.0
    %924 = vmatprep.subr.mxu0 0.0
    %925 = vmatpush1.msra.mxu0 0.0
    %926 = vmatprep.subr.mxu0 0.0
    %927 = vmatpush1.msra.mxu0 0.0
    %928 = vmatprep.subr.mxu0 0.0
    %v929 = vand.u32 %v641, 4294901760
    %930 = vmatpush1.msra.mxu0 %v929
    %931 = vmatprep.subr.mxu0 0.0
    %932 = vmatpush2.msra.mxu0 0.0
    %933 = vmatprep.subr.mxu0 0.0
    %934 = vmatpush2.msra.mxu0 0.0
    %935 = vmatprep.subr.mxu0 0.0
    %936 = vmatpush2.msra.mxu0 0.0
    %937 = vmatprep.subr.mxu0 0.0
    %938 = vmatpush2.msra.mxu0 0.0
    %939 = vmatprep.subr.mxu0 0.0
    %940 = vmatpush2.msra.mxu0 0.0
    %941 = vmatprep.subr.mxu0 0.0
    %942 = vmatpush2.msra.mxu0 0.0
    %943 = vmatprep.subr.mxu0 0.0
    %944 = vmatpush2.msra.mxu0 0.0
    %945 = vmatprep.subr.mxu0 0.0
    %946 = vmatpush2.msra.mxu0 0.0
    %947 = vmatprep.subr.mxu0 0.0
    %948 = vmatpush2.msra.mxu0 0.0
    %949 = vmatprep.subr.mxu0 0.0
    %950 = vmatpush2.msra.mxu0 0.0
    %951 = vmatprep.subr.mxu0 0.0
    %952 = vmatpush2.msra.mxu0 0.0
    %953 = vmatprep.subr.mxu0 0.0
    %954 = vmatpush2.msra.mxu0 0.0
    %955 = vmatprep.subr.mxu0 0.0
    %956 = vmatpush2.msra.mxu0 0.0
    %957 = vmatprep.subr.mxu0 0.0
    %958 = vmatpush2.msra.mxu0 0.0
    %959 = vmatprep.subr.mxu0 0.0
    %960 = vmatpush2.msra.mxu0 0.0
    %961 = vmatprep.subr.mxu0 0.0
    %962 = vmatpush2.msra.mxu0 0.0
    %963 = vmatprep.mubr.f32.mxu0 0.0
    %v964 = vand.u32 %v644, 4294901760
    %v965 = vsub.f32 %v644, %v964
    %v966 = vand.u32 %v965, 4294901760
    %967 = vmatmul.mubr.f32.gmra.mxu0 %v966
    %v968 = vpop.f32.mrf.mxu0
    %v969 = vadd.f32 %v888, %v968
    %v970 = vpop.f32.mrf.mxu0
    %971 = vmatprep.mubr.f32.mxu0 0.0
    %v972 = vand.u32 %v647, 4294901760
    %v973 = vsub.f32 %v647, %v972
    %v974 = vand.u32 %v973, 4294901760
    %975 = vmatmul.mubr.f32.gmra.mxu0 %v974
    %v976 = vpop.f32.mrf.mxu0
    %v977 = vadd.f32 %v895, %v976
    %v978 = vpop.f32.mrf.mxu0
    %979 = vdwg.mxu0
    %980 = vmatprep.subr.mxu0 0.0
    %981 = vmatpush1.msra.mxu0 0.0
    %982 = vmatprep.subr.mxu0 0.0
    %983 = vmatpush1.msra.mxu0 0.0
    %984 = vmatprep.subr.mxu0 0.0
    %985 = vmatpush1.msra.mxu0 0.0
    %986 = vmatprep.subr.mxu0 0.0
    %987 = vmatpush1.msra.mxu0 0.0
    %988 = vmatprep.subr.mxu0 0.0
    %989 = vmatpush1.msra.mxu0 0.0
    %990 = vmatprep.subr.mxu0 0.0
    %991 = vmatpush1.msra.mxu0 0.0
    %992 = vmatprep.subr.mxu0 0.0
    %993 = vmatpush1.msra.mxu0 0.0
    %994 = vmatprep.subr.mxu0 0.0
    %995 = vmatpush1.msra.mxu0 0.0
    %996 = vmatprep.subr.mxu0 0.0
    %997 = vmatpush1.msra.mxu0 0.0
    %998 = vmatprep.subr.mxu0 0.0
    %999 = vmatpush1.msra.mxu0 0.0
    %1000 = vmatprep.subr.mxu0 0.0
    %1001 = vmatpush1.msra.mxu0 0.0
    %1002 = vmatprep.subr.mxu0 0.0
    %1003 = vmatpush1.msra.mxu0 0.0
    %1004 = vmatprep.subr.mxu0 0.0
    %1005 = vmatpush1.msra.mxu0 0.0
    %1006 = vmatprep.subr.mxu0 0.0
    %1007 = vmatpush1.msra.mxu0 0.0
    %1008 = vmatprep.subr.mxu0 0.0
    %1009 = vmatpush1.msra.mxu0 0.0
    %1010 = vmatprep.subr.mxu0 0.0
    %v1011 = vand.u32 %v641, 4294901760
    %v1012 = vsub.f32 %v641, %v1011
    %v1013 = vand.u32 %v1012, 4294901760
    %1014 = vmatpush1.msra.mxu0 %v1013
    %1015 = vmatprep.subr.mxu0 0.0
    %1016 = vmatpush2.msra.mxu0 0.0
    %1017 = vmatprep.subr.mxu0 0.0
    %1018 = vmatpush2.msra.mxu0 0.0
    %1019 = vmatprep.subr.mxu0 0.0
    %1020 = vmatpush2.msra.mxu0 0.0
    %1021 = vmatprep.subr.mxu0 0.0
    %1022 = vmatpush2.msra.mxu0 0.0
    %1023 = vmatprep.subr.mxu0 0.0
    %1024 = vmatpush2.msra.mxu0 0.0
    %1025 = vmatprep.subr.mxu0 0.0
    %1026 = vmatpush2.msra.mxu0 0.0
    %1027 = vmatprep.subr.mxu0 0.0
    %1028 = vmatpush2.msra.mxu0 0.0
    %1029 = vmatprep.subr.mxu0 0.0
    %1030 = vmatpush2.msra.mxu0 0.0
    %1031 = vmatprep.subr.mxu0 0.0
    %1032 = vmatpush2.msra.mxu0 0.0
    %1033 = vmatprep.subr.mxu0 0.0
    %1034 = vmatpush2.msra.mxu0 0.0
    %1035 = vmatprep.subr.mxu0 0.0
    %1036 = vmatpush2.msra.mxu0 0.0
    %1037 = vmatprep.subr.mxu0 0.0
    %1038 = vmatpush2.msra.mxu0 0.0
    %1039 = vmatprep.subr.mxu0 0.0
    %1040 = vmatpush2.msra.mxu0 0.0
    %1041 = vmatprep.subr.mxu0 0.0
    %1042 = vmatpush2.msra.mxu0 0.0
    %1043 = vmatprep.subr.mxu0 0.0
    %1044 = vmatpush2.msra.mxu0 0.0
    %1045 = vmatprep.subr.mxu0 0.0
    %1046 = vmatpush2.msra.mxu0 0.0
    %1047 = vmatprep.mubr.f32.mxu0 0.0
    %v1048 = vand.u32 %v644, 4294901760
    %1049 = vmatmul.mubr.f32.gmra.mxu0 %v1048
    %v1050 = vpop.f32.mrf.mxu0
    %v1051 = vadd.f32 %v969, %v1050
    %v1052 = vpop.f32.mrf.mxu0
    %1053 = vmatprep.mubr.f32.mxu0 0.0
    %v1054 = vand.u32 %v647, 4294901760
    %1055 = vmatmul.mubr.f32.gmra.mxu0 %v1054
    %v1056 = vpop.f32.mrf.mxu0
    %v1057 = vadd.f32 %v977, %v1056
    %v1058 = vpop.f32.mrf.mxu0
    %1059 = vdwg.mxu0
    %1060 = vmatprep.subr.mxu0 0.0
    %1061 = vmatpush1.msra.mxu0 0.0
    %1062 = vmatprep.subr.mxu0 0.0
    %1063 = vmatpush1.msra.mxu0 0.0
    %1064 = vmatprep.subr.mxu0 0.0
    %1065 = vmatpush1.msra.mxu0 0.0
    %1066 = vmatprep.subr.mxu0 0.0
    %1067 = vmatpush1.msra.mxu0 0.0
    %1068 = vmatprep.subr.mxu0 0.0
    %1069 = vmatpush1.msra.mxu0 0.0
    %1070 = vmatprep.subr.mxu0 0.0
    %1071 = vmatpush1.msra.mxu0 0.0
    %1072 = vmatprep.subr.mxu0 0.0
    %1073 = vmatpush1.msra.mxu0 0.0
    %1074 = vmatprep.subr.mxu0 0.0
    %1075 = vmatpush1.msra.mxu0 0.0
    %1076 = vmatprep.subr.mxu0 0.0
    %1077 = vmatpush1.msra.mxu0 0.0
    %1078 = vmatprep.subr.mxu0 0.0
    %1079 = vmatpush1.msra.mxu0 0.0
    %1080 = vmatprep.subr.mxu0 0.0
    %1081 = vmatpush1.msra.mxu0 0.0
    %1082 = vmatprep.subr.mxu0 0.0
    %1083 = vmatpush1.msra.mxu0 0.0
    %1084 = vmatprep.subr.mxu0 0.0
    %1085 = vmatpush1.msra.mxu0 0.0
    %1086 = vmatprep.subr.mxu0 0.0
    %1087 = vmatpush1.msra.mxu0 0.0
    %1088 = vmatprep.subr.mxu0 0.0
    %1089 = vmatpush1.msra.mxu0 0.0
    %1090 = vmatprep.subr.mxu0 0.0
    %v1091 = vand.u32 %v641, 4294901760
    %1092 = vmatpush1.msra.mxu0 %v1091
    %1093 = vmatprep.subr.mxu0 0.0
    %1094 = vmatpush2.msra.mxu0 0.0
    %1095 = vmatprep.subr.mxu0 0.0
    %1096 = vmatpush2.msra.mxu0 0.0
    %1097 = vmatprep.subr.mxu0 0.0
    %1098 = vmatpush2.msra.mxu0 0.0
    %1099 = vmatprep.subr.mxu0 0.0
    %1100 = vmatpush2.msra.mxu0 0.0
    %1101 = vmatprep.subr.mxu0 0.0
    %1102 = vmatpush2.msra.mxu0 0.0
    %1103 = vmatprep.subr.mxu0 0.0
    %1104 = vmatpush2.msra.mxu0 0.0
    %1105 = vmatprep.subr.mxu0 0.0
    %1106 = vmatpush2.msra.mxu0 0.0
    %1107 = vmatprep.subr.mxu0 0.0
    %1108 = vmatpush2.msra.mxu0 0.0
    %1109 = vmatprep.subr.mxu0 0.0
    %1110 = vmatpush2.msra.mxu0 0.0
    %1111 = vmatprep.subr.mxu0 0.0
    %1112 = vmatpush2.msra.mxu0 0.0
    %1113 = vmatprep.subr.mxu0 0.0
    %1114 = vmatpush2.msra.mxu0 0.0
    %1115 = vmatprep.subr.mxu0 0.0
    %1116 = vmatpush2.msra.mxu0 0.0
    %1117 = vmatprep.subr.mxu0 0.0
    %1118 = vmatpush2.msra.mxu0 0.0
    %1119 = vmatprep.subr.mxu0 0.0
    %1120 = vmatpush2.msra.mxu0 0.0
    %1121 = vmatprep.subr.mxu0 0.0
    %1122 = vmatpush2.msra.mxu0 0.0
    %1123 = vmatprep.subr.mxu0 0.0
    %1124 = vmatpush2.msra.mxu0 0.0
    %1125 = vmatprep.mubr.f32.mxu0 0.0
    %v1126 = vand.u32 %v644, 4294901760
    %1127 = vmatmul.mubr.f32.gmra.mxu0 %v1126
    %v1128 = vpop.f32.mrf.mxu0
    %v1129 = vadd.f32 %v1051, %v1128
    %v1130 = vpop.f32.mrf.mxu0
    %1131 = vmatprep.mubr.f32.mxu0 0.0
    %v1132 = vand.u32 %v647, 4294901760
    %1133 = vmatmul.mubr.f32.gmra.mxu0 %v1132
    %v1134 = vpop.f32.mrf.mxu0
    %v1135 = vadd.f32 %v1057, %v1134
    %v1136 = vpop.f32.mrf.mxu0
    %1137 = vdwg.mxu0
    %vm1138 = vcmask 261120
    %v1140 = vsel %vm1138, %v633, 0
    %v1143 = vsel %vm1138, %v634, 0
    %1145 = vmatprep.subr.mxu0 0.0
    %1146 = vmatpush1.msra.mxu0 0.0
    %1147 = vmatprep.subr.mxu0 0.0
    %1148 = vmatpush1.msra.mxu0 0.0
    %1149 = vmatprep.subr.mxu0 0.0
    %1150 = vmatpush1.msra.mxu0 0.0
    %1151 = vmatprep.subr.mxu0 0.0
    %1152 = vmatpush1.msra.mxu0 0.0
    %1153 = vmatprep.subr.mxu0 0.0
    %1154 = vmatpush1.msra.mxu0 0.0
    %1155 = vmatprep.subr.mxu0 0.0
    %1156 = vmatpush1.msra.mxu0 0.0
    %1157 = vmatprep.subr.mxu0 0.0
    %1158 = vmatpush1.msra.mxu0 0.0
    %1159 = vmatprep.subr.mxu0 0.0
    %1160 = vmatpush1.msra.mxu0 0.0
    %1161 = vmatprep.subr.mxu0 0.0
    %1162 = vmatpush1.msra.mxu0 0.0
    %1163 = vmatprep.subr.mxu0 0.0
    %1164 = vmatpush1.msra.mxu0 0.0
    %1165 = vmatprep.subr.mxu0 0.0
    %1166 = vmatpush1.msra.mxu0 0.0
    %1167 = vmatprep.subr.mxu0 0.0
    %1168 = vmatpush1.msra.mxu0 0.0
    %1169 = vmatprep.subr.mxu0 0.0
    %v1170 = vand.u32 %v638, 4294901760
    %1171 = vmatpush1.msra.mxu0 %v1170
    %1172 = vmatprep.subr.mxu0 0.0
    %v1173 = vand.u32 %v637, 4294901760
    %1174 = vmatpush1.msra.mxu0 %v1173
    %1175 = vmatprep.subr.mxu0 0.0
    %v1176 = vand.u32 %v636, 4294901760
    %1177 = vmatpush1.msra.mxu0 %v1176
    %1178 = vmatprep.subr.mxu0 0.0
    %v1179 = vand.u32 %v635, 4294901760
    %1180 = vmatpush1.msra.mxu0 %v1179
    %1181 = vmatprep.subr.mxu0 0.0
    %1182 = vmatpush2.msra.mxu0 0.0
    %1183 = vmatprep.subr.mxu0 0.0
    %1184 = vmatpush2.msra.mxu0 0.0
    %1185 = vmatprep.subr.mxu0 0.0
    %1186 = vmatpush2.msra.mxu0 0.0
    %1187 = vmatprep.subr.mxu0 0.0
    %1188 = vmatpush2.msra.mxu0 0.0
    %1189 = vmatprep.subr.mxu0 0.0
    %1190 = vmatpush2.msra.mxu0 0.0
    %1191 = vmatprep.subr.mxu0 0.0
    %1192 = vmatpush2.msra.mxu0 0.0
    %1193 = vmatprep.subr.mxu0 0.0
    %1194 = vmatpush2.msra.mxu0 0.0
    %1195 = vmatprep.subr.mxu0 0.0
    %1196 = vmatpush2.msra.mxu0 0.0
    %1197 = vmatprep.subr.mxu0 0.0
    %1198 = vmatpush2.msra.mxu0 0.0
    %1199 = vmatprep.subr.mxu0 0.0
    %1200 = vmatpush2.msra.mxu0 0.0
    %1201 = vmatprep.subr.mxu0 0.0
    %1202 = vmatpush2.msra.mxu0 0.0
    %1203 = vmatprep.subr.mxu0 0.0
    %1204 = vmatpush2.msra.mxu0 0.0
    %1205 = vmatprep.subr.mxu0 0.0
    %1206 = vmatpush2.msra.mxu0 0.0
    %1207 = vmatprep.subr.mxu0 0.0
    %1208 = vmatpush2.msra.mxu0 0.0
    %1209 = vmatprep.subr.mxu0 0.0
    %1210 = vmatpush2.msra.mxu0 0.0
    %1211 = vmatprep.subr.mxu0 0.0
    %1212 = vmatpush2.msra.mxu0 0.0
    %1213 = vmatprep.mubr.f32.mxu0 0.0
    %v1214 = vand.u32 %v1140, 4294901760
    %v1215 = vsub.f32 %v1140, %v1214
    %v1216 = vand.u32 %v1215, 4294901760
    %v1217 = vsub.f32 %v1215, %v1216
    %v1218 = vand.u32 %v1217, 4294901760
    %1219 = vmatmul.mubr.f32.gmra.mxu0 %v1218
    %v1220 = vpop.f32.mrf.mxu0
    %v1221 = vadd.f32 %v1129, %v1220
    %v1222 = vpop.f32.mrf.mxu0
    %1223 = vmatprep.mubr.f32.mxu0 0.0
    %v1224 = vand.u32 %v1143, 4294901760
    %v1225 = vsub.f32 %v1143, %v1224
    %v1226 = vand.u32 %v1225, 4294901760
    %v1227 = vsub.f32 %v1225, %v1226
    %v1228 = vand.u32 %v1227, 4294901760
    %1229 = vmatmul.mubr.f32.gmra.mxu0 %v1228
    %v1230 = vpop.f32.mrf.mxu0
    %v1231 = vadd.f32 %v1135, %v1230
    %v1232 = vpop.f32.mrf.mxu0
    %1233 = vdwg.mxu0
    %1234 = vmatprep.subr.mxu0 0.0
    %1235 = vmatpush1.msra.mxu0 0.0
    %1236 = vmatprep.subr.mxu0 0.0
    %1237 = vmatpush1.msra.mxu0 0.0
    %1238 = vmatprep.subr.mxu0 0.0
    %1239 = vmatpush1.msra.mxu0 0.0
    %1240 = vmatprep.subr.mxu0 0.0
    %1241 = vmatpush1.msra.mxu0 0.0
    %1242 = vmatprep.subr.mxu0 0.0
    %1243 = vmatpush1.msra.mxu0 0.0
    %1244 = vmatprep.subr.mxu0 0.0
    %1245 = vmatpush1.msra.mxu0 0.0
    %1246 = vmatprep.subr.mxu0 0.0
    %1247 = vmatpush1.msra.mxu0 0.0
    %1248 = vmatprep.subr.mxu0 0.0
    %1249 = vmatpush1.msra.mxu0 0.0
    %1250 = vmatprep.subr.mxu0 0.0
    %1251 = vmatpush1.msra.mxu0 0.0
    %1252 = vmatprep.subr.mxu0 0.0
    %1253 = vmatpush1.msra.mxu0 0.0
    %1254 = vmatprep.subr.mxu0 0.0
    %1255 = vmatpush1.msra.mxu0 0.0
    %1256 = vmatprep.subr.mxu0 0.0
    %1257 = vmatpush1.msra.mxu0 0.0
    %1258 = vmatprep.subr.mxu0 0.0
    %v1259 = vand.u32 %v638, 4294901760
    %v1260 = vsub.f32 %v638, %v1259
    %v1261 = vand.u32 %v1260, 4294901760
    %v1262 = vsub.f32 %v1260, %v1261
    %v1263 = vand.u32 %v1262, 4294901760
    %1264 = vmatpush1.msra.mxu0 %v1263
    %1265 = vmatprep.subr.mxu0 0.0
    %v1266 = vand.u32 %v637, 4294901760
    %v1267 = vsub.f32 %v637, %v1266
    %v1268 = vand.u32 %v1267, 4294901760
    %v1269 = vsub.f32 %v1267, %v1268
    %v1270 = vand.u32 %v1269, 4294901760
    %1271 = vmatpush1.msra.mxu0 %v1270
    %1272 = vmatprep.subr.mxu0 0.0
    %v1273 = vand.u32 %v636, 4294901760
    %v1274 = vsub.f32 %v636, %v1273
    %v1275 = vand.u32 %v1274, 4294901760
    %v1276 = vsub.f32 %v1274, %v1275
    %v1277 = vand.u32 %v1276, 4294901760
    %1278 = vmatpush1.msra.mxu0 %v1277
    %1279 = vmatprep.subr.mxu0 0.0
    %v1280 = vand.u32 %v635, 4294901760
    %v1281 = vsub.f32 %v635, %v1280
    %v1282 = vand.u32 %v1281, 4294901760
    %v1283 = vsub.f32 %v1281, %v1282
    %v1284 = vand.u32 %v1283, 4294901760
    %1285 = vmatpush1.msra.mxu0 %v1284
    %1286 = vmatprep.subr.mxu0 0.0
    %1287 = vmatpush2.msra.mxu0 0.0
    %1288 = vmatprep.subr.mxu0 0.0
    %1289 = vmatpush2.msra.mxu0 0.0
    %1290 = vmatprep.subr.mxu0 0.0
    %1291 = vmatpush2.msra.mxu0 0.0
    %1292 = vmatprep.subr.mxu0 0.0
    %1293 = vmatpush2.msra.mxu0 0.0
    %1294 = vmatprep.subr.mxu0 0.0
    %1295 = vmatpush2.msra.mxu0 0.0
    %1296 = vmatprep.subr.mxu0 0.0
    %1297 = vmatpush2.msra.mxu0 0.0
    %1298 = vmatprep.subr.mxu0 0.0
    %1299 = vmatpush2.msra.mxu0 0.0
    %1300 = vmatprep.subr.mxu0 0.0
    %1301 = vmatpush2.msra.mxu0 0.0
    %1302 = vmatprep.subr.mxu0 0.0
    %1303 = vmatpush2.msra.mxu0 0.0
    %1304 = vmatprep.subr.mxu0 0.0
    %1305 = vmatpush2.msra.mxu0 0.0
    %1306 = vmatprep.subr.mxu0 0.0
    %1307 = vmatpush2.msra.mxu0 0.0
    %1308 = vmatprep.subr.mxu0 0.0
    %1309 = vmatpush2.msra.mxu0 0.0
    %1310 = vmatprep.subr.mxu0 0.0
    %1311 = vmatpush2.msra.mxu0 0.0
    %1312 = vmatprep.subr.mxu0 0.0
    %1313 = vmatpush2.msra.mxu0 0.0
    %1314 = vmatprep.subr.mxu0 0.0
    %1315 = vmatpush2.msra.mxu0 0.0
    %1316 = vmatprep.subr.mxu0 0.0
    %1317 = vmatpush2.msra.mxu0 0.0
    %1318 = vmatprep.mubr.f32.mxu0 0.0
    %v1319 = vand.u32 %v1140, 4294901760
    %1320 = vmatmul.mubr.f32.gmra.mxu0 %v1319
    %v1321 = vpop.f32.mrf.mxu0
    %v1322 = vadd.f32 %v1221, %v1321
    %v1323 = vpop.f32.mrf.mxu0
    %1324 = vmatprep.mubr.f32.mxu0 0.0
    %v1325 = vand.u32 %v1143, 4294901760
    %1326 = vmatmul.mubr.f32.gmra.mxu0 %v1325
    %v1327 = vpop.f32.mrf.mxu0
    %v1328 = vadd.f32 %v1231, %v1327
    %v1329 = vpop.f32.mrf.mxu0
    %1330 = vdwg.mxu0
    %1331 = vmatprep.subr.mxu0 0.0
    %1332 = vmatpush1.msra.mxu0 0.0
    %1333 = vmatprep.subr.mxu0 0.0
    %1334 = vmatpush1.msra.mxu0 0.0
    %1335 = vmatprep.subr.mxu0 0.0
    %1336 = vmatpush1.msra.mxu0 0.0
    %1337 = vmatprep.subr.mxu0 0.0
    %1338 = vmatpush1.msra.mxu0 0.0
    %1339 = vmatprep.subr.mxu0 0.0
    %1340 = vmatpush1.msra.mxu0 0.0
    %1341 = vmatprep.subr.mxu0 0.0
    %1342 = vmatpush1.msra.mxu0 0.0
    %1343 = vmatprep.subr.mxu0 0.0
    %1344 = vmatpush1.msra.mxu0 0.0
    %1345 = vmatprep.subr.mxu0 0.0
    %1346 = vmatpush1.msra.mxu0 0.0
    %1347 = vmatprep.subr.mxu0 0.0
    %1348 = vmatpush1.msra.mxu0 0.0
    %1349 = vmatprep.subr.mxu0 0.0
    %1350 = vmatpush1.msra.mxu0 0.0
    %1351 = vmatprep.subr.mxu0 0.0
    %1352 = vmatpush1.msra.mxu0 0.0
    %1353 = vmatprep.subr.mxu0 0.0
    %1354 = vmatpush1.msra.mxu0 0.0
    %1355 = vmatprep.subr.mxu0 0.0
    %v1356 = vand.u32 %v638, 4294901760
    %v1357 = vsub.f32 %v638, %v1356
    %1358 = vmatpush1.msra.mxu0 %v1357
    %1359 = vmatprep.subr.mxu0 0.0
    %v1360 = vand.u32 %v637, 4294901760
    %v1361 = vsub.f32 %v637, %v1360
    %1362 = vmatpush1.msra.mxu0 %v1361
    %1363 = vmatprep.subr.mxu0 0.0
    %v1364 = vand.u32 %v636, 4294901760
    %v1365 = vsub.f32 %v636, %v1364
    %1366 = vmatpush1.msra.mxu0 %v1365
    %1367 = vmatprep.subr.mxu0 0.0
    %v1368 = vand.u32 %v635, 4294901760
    %v1369 = vsub.f32 %v635, %v1368
    %1370 = vmatpush1.msra.mxu0 %v1369
    %1371 = vmatprep.subr.mxu0 0.0
    %1372 = vmatpush2.msra.mxu0 0.0
    %1373 = vmatprep.subr.mxu0 0.0
    %1374 = vmatpush2.msra.mxu0 0.0
    %1375 = vmatprep.subr.mxu0 0.0
    %1376 = vmatpush2.msra.mxu0 0.0
    %1377 = vmatprep.subr.mxu0 0.0
    %1378 = vmatpush2.msra.mxu0 0.0
    %1379 = vmatprep.subr.mxu0 0.0
    %1380 = vmatpush2.msra.mxu0 0.0
    %1381 = vmatprep.subr.mxu0 0.0
    %1382 = vmatpush2.msra.mxu0 0.0
    %1383 = vmatprep.subr.mxu0 0.0
    %1384 = vmatpush2.msra.mxu0 0.0
    %1385 = vmatprep.subr.mxu0 0.0
    %1386 = vmatpush2.msra.mxu0 0.0
    %1387 = vmatprep.subr.mxu0 0.0
    %1388 = vmatpush2.msra.mxu0 0.0
    %1389 = vmatprep.subr.mxu0 0.0
    %1390 = vmatpush2.msra.mxu0 0.0
    %1391 = vmatprep.subr.mxu0 0.0
    %1392 = vmatpush2.msra.mxu0 0.0
    %1393 = vmatprep.subr.mxu0 0.0
    %1394 = vmatpush2.msra.mxu0 0.0
    %1395 = vmatprep.subr.mxu0 0.0
    %1396 = vmatpush2.msra.mxu0 0.0
    %1397 = vmatprep.subr.mxu0 0.0
    %1398 = vmatpush2.msra.mxu0 0.0
    %1399 = vmatprep.subr.mxu0 0.0
    %1400 = vmatpush2.msra.mxu0 0.0
    %1401 = vmatprep.subr.mxu0 0.0
    %1402 = vmatpush2.msra.mxu0 0.0
    %1403 = vmatprep.mubr.f32.mxu0 0.0
    %v1404 = vand.u32 %v1140, 4294901760
    %v1405 = vsub.f32 %v1140, %v1404
    %1406 = vmatmul.mubr.f32.gmra.mxu0 %v1405
    %v1407 = vpop.f32.mrf.mxu0
    %v1408 = vadd.f32 %v1322, %v1407
    %v1409 = vpop.f32.mrf.mxu0
    %1410 = vmatprep.mubr.f32.mxu0 0.0
    %v1411 = vand.u32 %v1143, 4294901760
    %v1412 = vsub.f32 %v1143, %v1411
    %1413 = vmatmul.mubr.f32.gmra.mxu0 %v1412
    %v1414 = vpop.f32.mrf.mxu0
    %v1415 = vadd.f32 %v1328, %v1414
    %v1416 = vpop.f32.mrf.mxu0
    %1417 = vdwg.mxu0
    %1418 = vmatprep.subr.mxu0 0.0
    %1419 = vmatpush1.msra.mxu0 0.0
    %1420 = vmatprep.subr.mxu0 0.0
    %1421 = vmatpush1.msra.mxu0 0.0
    %1422 = vmatprep.subr.mxu0 0.0
    %1423 = vmatpush1.msra.mxu0 0.0
    %1424 = vmatprep.subr.mxu0 0.0
    %1425 = vmatpush1.msra.mxu0 0.0
    %1426 = vmatprep.subr.mxu0 0.0
    %1427 = vmatpush1.msra.mxu0 0.0
    %1428 = vmatprep.subr.mxu0 0.0
    %1429 = vmatpush1.msra.mxu0 0.0
    %1430 = vmatprep.subr.mxu0 0.0
    %1431 = vmatpush1.msra.mxu0 0.0
    %1432 = vmatprep.subr.mxu0 0.0
    %1433 = vmatpush1.msra.mxu0 0.0
    %1434 = vmatprep.subr.mxu0 0.0
    %1435 = vmatpush1.msra.mxu0 0.0
    %1436 = vmatprep.subr.mxu0 0.0
    %1437 = vmatpush1.msra.mxu0 0.0
    %1438 = vmatprep.subr.mxu0 0.0
    %1439 = vmatpush1.msra.mxu0 0.0
    %1440 = vmatprep.subr.mxu0 0.0
    %1441 = vmatpush1.msra.mxu0 0.0
    %1442 = vmatprep.subr.mxu0 0.0
    %v1443 = vand.u32 %v638, 4294901760
    %1444 = vmatpush1.msra.mxu0 %v1443
    %1445 = vmatprep.subr.mxu0 0.0
    %v1446 = vand.u32 %v637, 4294901760
    %1447 = vmatpush1.msra.mxu0 %v1446
    %1448 = vmatprep.subr.mxu0 0.0
    %v1449 = vand.u32 %v636, 4294901760
    %1450 = vmatpush1.msra.mxu0 %v1449
    %1451 = vmatprep.subr.mxu0 0.0
    %v1452 = vand.u32 %v635, 4294901760
    %1453 = vmatpush1.msra.mxu0 %v1452
    %1454 = vmatprep.subr.mxu0 0.0
    %1455 = vmatpush2.msra.mxu0 0.0
    %1456 = vmatprep.subr.mxu0 0.0
    %1457 = vmatpush2.msra.mxu0 0.0
    %1458 = vmatprep.subr.mxu0 0.0
    %1459 = vmatpush2.msra.mxu0 0.0
    %1460 = vmatprep.subr.mxu0 0.0
    %1461 = vmatpush2.msra.mxu0 0.0
    %1462 = vmatprep.subr.mxu0 0.0
    %1463 = vmatpush2.msra.mxu0 0.0
    %1464 = vmatprep.subr.mxu0 0.0
    %1465 = vmatpush2.msra.mxu0 0.0
    %1466 = vmatprep.subr.mxu0 0.0
    %1467 = vmatpush2.msra.mxu0 0.0
    %1468 = vmatprep.subr.mxu0 0.0
    %1469 = vmatpush2.msra.mxu0 0.0
    %1470 = vmatprep.subr.mxu0 0.0
    %1471 = vmatpush2.msra.mxu0 0.0
    %1472 = vmatprep.subr.mxu0 0.0
    %1473 = vmatpush2.msra.mxu0 0.0
    %1474 = vmatprep.subr.mxu0 0.0
    %1475 = vmatpush2.msra.mxu0 0.0
    %1476 = vmatprep.subr.mxu0 0.0
    %1477 = vmatpush2.msra.mxu0 0.0
    %1478 = vmatprep.subr.mxu0 0.0
    %1479 = vmatpush2.msra.mxu0 0.0
    %1480 = vmatprep.subr.mxu0 0.0
    %1481 = vmatpush2.msra.mxu0 0.0
    %1482 = vmatprep.subr.mxu0 0.0
    %1483 = vmatpush2.msra.mxu0 0.0
    %1484 = vmatprep.subr.mxu0 0.0
    %1485 = vmatpush2.msra.mxu0 0.0
    %1486 = vmatprep.mubr.f32.mxu0 0.0
    %v1487 = vand.u32 %v1140, 4294901760
    %v1488 = vsub.f32 %v1140, %v1487
    %v1489 = vand.u32 %v1488, 4294901760
    %1490 = vmatmul.mubr.f32.gmra.mxu0 %v1489
    %v1491 = vpop.f32.mrf.mxu0
    %v1492 = vadd.f32 %v1408, %v1491
    %v1493 = vpop.f32.mrf.mxu0
    %1494 = vmatprep.mubr.f32.mxu0 0.0
    %v1495 = vand.u32 %v1143, 4294901760
    %v1496 = vsub.f32 %v1143, %v1495
    %v1497 = vand.u32 %v1496, 4294901760
    %1498 = vmatmul.mubr.f32.gmra.mxu0 %v1497
    %v1499 = vpop.f32.mrf.mxu0
    %v1500 = vadd.f32 %v1415, %v1499
    %v1501 = vpop.f32.mrf.mxu0
    %1502 = vdwg.mxu0
    %1503 = vmatprep.subr.mxu0 0.0
    %1504 = vmatpush1.msra.mxu0 0.0
    %1505 = vmatprep.subr.mxu0 0.0
    %1506 = vmatpush1.msra.mxu0 0.0
    %1507 = vmatprep.subr.mxu0 0.0
    %1508 = vmatpush1.msra.mxu0 0.0
    %1509 = vmatprep.subr.mxu0 0.0
    %1510 = vmatpush1.msra.mxu0 0.0
    %1511 = vmatprep.subr.mxu0 0.0
    %1512 = vmatpush1.msra.mxu0 0.0
    %1513 = vmatprep.subr.mxu0 0.0
    %1514 = vmatpush1.msra.mxu0 0.0
    %1515 = vmatprep.subr.mxu0 0.0
    %1516 = vmatpush1.msra.mxu0 0.0
    %1517 = vmatprep.subr.mxu0 0.0
    %1518 = vmatpush1.msra.mxu0 0.0
    %1519 = vmatprep.subr.mxu0 0.0
    %1520 = vmatpush1.msra.mxu0 0.0
    %1521 = vmatprep.subr.mxu0 0.0
    %1522 = vmatpush1.msra.mxu0 0.0
    %1523 = vmatprep.subr.mxu0 0.0
    %1524 = vmatpush1.msra.mxu0 0.0
    %1525 = vmatprep.subr.mxu0 0.0
    %1526 = vmatpush1.msra.mxu0 0.0
    %1527 = vmatprep.subr.mxu0 0.0
    %v1528 = vand.u32 %v638, 4294901760
    %v1529 = vsub.f32 %v638, %v1528
    %v1530 = vand.u32 %v1529, 4294901760
    %1531 = vmatpush1.msra.mxu0 %v1530
    %1532 = vmatprep.subr.mxu0 0.0
    %v1533 = vand.u32 %v637, 4294901760
    %v1534 = vsub.f32 %v637, %v1533
    %v1535 = vand.u32 %v1534, 4294901760
    %1536 = vmatpush1.msra.mxu0 %v1535
    %1537 = vmatprep.subr.mxu0 0.0
    %v1538 = vand.u32 %v636, 4294901760
    %v1539 = vsub.f32 %v636, %v1538
    %v1540 = vand.u32 %v1539, 4294901760
    %1541 = vmatpush1.msra.mxu0 %v1540
    %1542 = vmatprep.subr.mxu0 0.0
    %v1543 = vand.u32 %v635, 4294901760
    %v1544 = vsub.f32 %v635, %v1543
    %v1545 = vand.u32 %v1544, 4294901760
    %1546 = vmatpush1.msra.mxu0 %v1545
    %1547 = vmatprep.subr.mxu0 0.0
    %1548 = vmatpush2.msra.mxu0 0.0
    %1549 = vmatprep.subr.mxu0 0.0
    %1550 = vmatpush2.msra.mxu0 0.0
    %1551 = vmatprep.subr.mxu0 0.0
    %1552 = vmatpush2.msra.mxu0 0.0
    %1553 = vmatprep.subr.mxu0 0.0
    %1554 = vmatpush2.msra.mxu0 0.0
    %1555 = vmatprep.subr.mxu0 0.0
    %1556 = vmatpush2.msra.mxu0 0.0
    %1557 = vmatprep.subr.mxu0 0.0
    %1558 = vmatpush2.msra.mxu0 0.0
    %1559 = vmatprep.subr.mxu0 0.0
    %1560 = vmatpush2.msra.mxu0 0.0
    %1561 = vmatprep.subr.mxu0 0.0
    %1562 = vmatpush2.msra.mxu0 0.0
    %1563 = vmatprep.subr.mxu0 0.0
    %1564 = vmatpush2.msra.mxu0 0.0
    %1565 = vmatprep.subr.mxu0 0.0
    %1566 = vmatpush2.msra.mxu0 0.0
    %1567 = vmatprep.subr.mxu0 0.0
    %1568 = vmatpush2.msra.mxu0 0.0
    %1569 = vmatprep.subr.mxu0 0.0
    %1570 = vmatpush2.msra.mxu0 0.0
    %1571 = vmatprep.subr.mxu0 0.0
    %1572 = vmatpush2.msra.mxu0 0.0
    %1573 = vmatprep.subr.mxu0 0.0
    %1574 = vmatpush2.msra.mxu0 0.0
    %1575 = vmatprep.subr.mxu0 0.0
    %1576 = vmatpush2.msra.mxu0 0.0
    %1577 = vmatprep.subr.mxu0 0.0
    %1578 = vmatpush2.msra.mxu0 0.0
    %1579 = vmatprep.mubr.f32.mxu0 0.0
    %v1580 = vand.u32 %v1140, 4294901760
    %1581 = vmatmul.mubr.f32.gmra.mxu0 %v1580
    %v1582 = vpop.f32.mrf.mxu0
    %v1583 = vadd.f32 %v1492, %v1582
    %v1584 = vpop.f32.mrf.mxu0
    %1585 = vmatprep.mubr.f32.mxu0 0.0
    %v1586 = vand.u32 %v1143, 4294901760
    %1587 = vmatmul.mubr.f32.gmra.mxu0 %v1586
    %v1588 = vpop.f32.mrf.mxu0
    %v1589 = vadd.f32 %v1500, %v1588
    %v1590 = vpop.f32.mrf.mxu0
    %1591 = vdwg.mxu0
    %1592 = vmatprep.subr.mxu0 0.0
    %1593 = vmatpush1.msra.mxu0 0.0
    %1594 = vmatprep.subr.mxu0 0.0
    %1595 = vmatpush1.msra.mxu0 0.0
    %1596 = vmatprep.subr.mxu0 0.0
    %1597 = vmatpush1.msra.mxu0 0.0
    %1598 = vmatprep.subr.mxu0 0.0
    %1599 = vmatpush1.msra.mxu0 0.0
    %1600 = vmatprep.subr.mxu0 0.0
    %1601 = vmatpush1.msra.mxu0 0.0
    %1602 = vmatprep.subr.mxu0 0.0
    %1603 = vmatpush1.msra.mxu0 0.0
    %1604 = vmatprep.subr.mxu0 0.0
    %1605 = vmatpush1.msra.mxu0 0.0
    %1606 = vmatprep.subr.mxu0 0.0
    %1607 = vmatpush1.msra.mxu0 0.0
    %1608 = vmatprep.subr.mxu0 0.0
    %1609 = vmatpush1.msra.mxu0 0.0
    %1610 = vmatprep.subr.mxu0 0.0
    %1611 = vmatpush1.msra.mxu0 0.0
    %1612 = vmatprep.subr.mxu0 0.0
    %1613 = vmatpush1.msra.mxu0 0.0
    %1614 = vmatprep.subr.mxu0 0.0
    %1615 = vmatpush1.msra.mxu0 0.0
    %1616 = vmatprep.subr.mxu0 0.0
    %v1617 = vand.u32 %v638, 4294901760
    %1618 = vmatpush1.msra.mxu0 %v1617
    %1619 = vmatprep.subr.mxu0 0.0
    %v1620 = vand.u32 %v637, 4294901760
    %1621 = vmatpush1.msra.mxu0 %v1620
    %1622 = vmatprep.subr.mxu0 0.0
    %v1623 = vand.u32 %v636, 4294901760
    %1624 = vmatpush1.msra.mxu0 %v1623
    %1625 = vmatprep.subr.mxu0 0.0
    %v1626 = vand.u32 %v635, 4294901760
    %1627 = vmatpush1.msra.mxu0 %v1626
    %1628 = vmatprep.subr.mxu0 0.0
    %1629 = vmatpush2.msra.mxu0 0.0
    %1630 = vmatprep.subr.mxu0 0.0
    %1631 = vmatpush2.msra.mxu0 0.0
    %1632 = vmatprep.subr.mxu0 0.0
    %1633 = vmatpush2.msra.mxu0 0.0
    %1634 = vmatprep.subr.mxu0 0.0
    %1635 = vmatpush2.msra.mxu0 0.0
    %1636 = vmatprep.subr.mxu0 0.0
    %1637 = vmatpush2.msra.mxu0 0.0
    %1638 = vmatprep.subr.mxu0 0.0
    %1639 = vmatpush2.msra.mxu0 0.0
    %1640 = vmatprep.subr.mxu0 0.0
    %1641 = vmatpush2.msra.mxu0 0.0
    %1642 = vmatprep.subr.mxu0 0.0
    %1643 = vmatpush2.msra.mxu0 0.0
    %1644 = vmatprep.subr.mxu0 0.0
    %1645 = vmatpush2.msra.mxu0 0.0
    %1646 = vmatprep.subr.mxu0 0.0
    %1647 = vmatpush2.msra.mxu0 0.0
    %1648 = vmatprep.subr.mxu0 0.0
    %1649 = vmatpush2.msra.mxu0 0.0
    %1650 = vmatprep.subr.mxu0 0.0
    %1651 = vmatpush2.msra.mxu0 0.0
    %1652 = vmatprep.subr.mxu0 0.0
    %1653 = vmatpush2.msra.mxu0 0.0
    %1654 = vmatprep.subr.mxu0 0.0
    %1655 = vmatpush2.msra.mxu0 0.0
    %1656 = vmatprep.subr.mxu0 0.0
    %1657 = vmatpush2.msra.mxu0 0.0
    %1658 = vmatprep.subr.mxu0 0.0
    %1659 = vmatpush2.msra.mxu0 0.0
    %1660 = vmatprep.mubr.f32.mxu0 0.0
    %v1661 = vand.u32 %v1140, 4294901760
    %1662 = vmatmul.mubr.f32.gmra.mxu0 %v1661
    %v1663 = vpop.f32.mrf.mxu0
    %v1664 = vadd.f32 %v1583, %v1663
    %v1665 = vpop.f32.mrf.mxu0
    %1666 = vmatprep.mubr.f32.mxu0 0.0
    %v1667 = vand.u32 %v1143, 4294901760
    %1668 = vmatmul.mubr.f32.gmra.mxu0 %v1667
    %v1669 = vpop.f32.mrf.mxu0
    %v1670 = vadd.f32 %v1589, %v1669
    %v1671 = vpop.f32.mrf.mxu0
    %1672 = vdwg.mxu0
    %vm1673 = vcmask 523264
    %1674 = vst.msk [vmem:[#allocation7] sm:$0xff] %vm1673, %v1664
    %1675 = vst.msk [vmem:[#allocation7 + $0x8] sm:$0xff] %vm1673, %v1670
    // Predicated region
    $region26: #{tpu_custom_call.1} parent=1 // pred_check
      _
    $region27: #{tpu_custom_call.1} parent=1 // pred_check_branch
      %1677 = sbr.rel (0) target = $region29
    $region28: #{tpu_custom_call.1} parent=1 // pred_region
      %s1679 = ssub.s32 256, 256
      %1680 = vsyncadd [#allocation6], %s1679
      %s1681 = sshll.u32 [#allocation7], 4
      %s1682 = int_to_ptr.vmem [resolvable:$true] %s1681
      %1687 = dma.vmem_to_hbm [thread:$0]  %s1682, 256, %s4, [#allocation6], 128, 128, 8
    $region29: #{tpu_custom_call.1} parent=1 // pred_fallthru
      _
    // Predicated region
    $region30: #{tpu_custom_call.1} parent=1 // pred_check
      _
    $region31: #{tpu_custom_call.1} parent=1 // pred_check_branch
      %1689 = sbr.rel (0) target = $region33
    $region32: #{tpu_custom_call.1} parent=1 // pred_region
      %1690 = dma.done [#allocation6], 256
    $region33: #{tpu_custom_call.1} parent=1 // pred_fallthru
      _
    %1691 = vsyncpa [#allocation5], 1
    %1692 = vsyncpa [#allocation6], 1

</llo_original>
